<compile_context>
chip_gen: v7x
topology: tpu7x:2x2x1
jax: 0.10.0
libtpu: 0.0.40
codegen_flags: <defaults>
</compile_context>

<pallas_src>
import functools
import math

import jax
import jax.numpy as jnp
from jax import lax
from jax.experimental import pallas as pl
from jax.experimental.pallas import tpu as pltpu  # noqa: F401  (TPU backend assumed)


# ---------------------------------------------------------------------------
# Fully fused MHA kernel (single grid step, everything resident in VMEM).
#   x_ref    : (3*B*S, D)  stacked [Q; K; V] activations
#   wqkv_ref : (D, D)      shared QKV weight, PyTorch layout (out_features, in_features)
#   w0_ref   : (D, D)      output-projection weight, PyTorch layout
#   o_ref    : (B, S, D)   output
# ---------------------------------------------------------------------------
def _mha_fused_kernel(x_ref, wqkv_ref, w0_ref, o_ref, *, h):
    B, S, D = o_ref.shape
    d_k = D // h
    BS = B * S
    scale = 1.0 / math.sqrt(d_k)

    wqkv = wqkv_ref[...]   # (D, D)
    w0 = w0_ref[...]       # (D, D)

    # ---- Shared-weight QKV projection, batch folded in: ONE MXU matmul ----
    # y = x @ W_qkv.T via dot_general contracting the LAST dims of both
    # operands (nn.Linear semantics, no materialized weight transpose).
    y = lax.dot_general(
        x_ref[...], wqkv, (((1,), (1,)), ((), ())),
        preferred_element_type=jnp.float32,
    )                                                           # (3*B*S, D)

    # Pre-scale Q by 1/sqrt(d_k): O(B*S*D) instead of dividing the S x S scores.
    q = (y[0:BS, :] * scale).reshape(B, S, D)                   # leading-dim split: free
    k = y[BS:2 * BS, :].reshape(B, S, D)
    v = y[2 * BS:3 * BS, :].reshape(B, S, D)

    # ---- Per-head attention, batched over B with 3-D einsums ----
    # Heads are contiguous d_k-wide lane slices of D (matches torch
    # .view(B, S, h, d_k)).  h is small & static -> unrolled Python loop.
    ctxs = []
    for hi in range(h):
        sl = slice(hi * d_k, (hi + 1) * d_k)
        qh = q[:, :, sl]                                        # (B, S, d_k)
        kh = k[:, :, sl]
        vh = v[:, :, sl]

        # scores = (Qh / sqrt(d_k)) Kh^T, batched over B.
        s = jnp.einsum("bqd,bkd->bqk", qh, kh,
                       preferred_element_type=jnp.float32)      # (B, S, S)

        m = jnp.max(s, axis=-1, keepdims=True)
        p = jnp.exp(s - m)
        w = p / jnp.sum(p, axis=-1, keepdims=True)              # exact softmax divide

        ctxs.append(jnp.einsum("bqk,bkd->bqd", w.astype(vh.dtype), vh,
                               preferred_element_type=jnp.float32))  # (B, S, d_k)

    # ---- Head concat (lane axis) + ONE full-depth output projection ----
    # concat_h(ctx_h) @ W_0.T as a single K=D matmul instead of h shallow ones.
    ctx = jnp.concatenate(ctxs, axis=-1).reshape(BS, D)         # (B*S, D)
    out = lax.dot_general(
        ctx, w0, (((1,), (1,)), ((), ())),
        preferred_element_type=jnp.float32,
    )                                                           # (B*S, D)

    o_ref[...] = out.reshape(B, S, D).astype(o_ref.dtype)


# ---------------------------------------------------------------------------
# Wrapper: single gridless pallas_call (whole problem resident in VMEM).
# ---------------------------------------------------------------------------
@functools.partial(jax.jit, static_argnames=("h",))
def multi_head_attention(Q, K, V, W_qkv, W_0, h):
    """Q, K, V: (B, S, D) float32.  W_qkv, W_0: (D, D) PyTorch layout (out, in)."""
    B, S, D = Q.shape
    assert D % h == 0

    # Wrapper-side (XLA) stacking: one lane-dense (3*B*S, D) input, a single
    # DMA descriptor instead of three, no in-kernel concatenate/copy.
    x = jnp.concatenate([Q, K, V], axis=0).reshape(3 * B * S, D)

    kernel = functools.partial(_mha_fused_kernel, h=h)

    # No grid: full arrays are the blocks (last two dims == array dims, so the
    # (8, 128) rule is satisfied), no per-step overhead, no double buffering.
    return pl.pallas_call(
        kernel,
        out_shape=jax.ShapeDtypeStruct((B, S, D), Q.dtype),
    )(x, W_qkv, W_0)


# ---------------------------------------------------------------------------
# Pure-JAX reference (sanity check against the PyTorch semantics).
# ---------------------------------------------------------------------------
def reference_mha(Q, K, V, W_qkv, W_0, h):
    B, S, D = Q.shape
    d_k = D // h

    def project(x):
        y = x @ W_qkv.T
        return y.reshape(B, S, h, d_k).transpose(0, 2, 1, 3)

    q, k, v = project(Q), project(K), project(V)
    scores = jnp.einsum("bhqd,bhkd->bhqk", q, k) / math.sqrt(d_k)
    w = jax.nn.softmax(scores, axis=-1)
    x = jnp.einsum("bhqk,bhkd->bhqd", w, v)
    x = x.transpose(0, 2, 1, 3).reshape(B, S, D)
    return x @ W_0.T


if __name__ == "__main__":
    # Small shapes consistent with the module's forward.
    B, S, d_model, h = 2, 8, 32, 4

    key = jax.random.PRNGKey(0)
    kq, kk, kv, kw1, kw2 = jax.random.split(key, 5)

    Q = jax.random.normal(kq, (B, S, d_model), dtype=jnp.float32)
    K = jax.random.normal(kk, (B, S, d_model), dtype=jnp.float32)
    V = jax.random.normal(kv, (B, S, d_model), dtype=jnp.float32)

    # Deterministic parameter init (same shape as nn.Linear(d_model, d_model)).
    bound = 1.0 / math.sqrt(d_model)
    W_qkv = jax.random.uniform(kw1, (d_model, d_model), jnp.float32, -bound, bound)
    W_0 = jax.random.uniform(kw2, (d_model, d_model), jnp.float32, -bound, bound)

    out = multi_head_attention(Q, K, V, W_qkv, W_0, h)
    out = jax.block_until_ready(out)

    ref = reference_mha(Q, K, V, W_qkv, W_0, h)
    assert out.shape == (B, S, d_model)
    # Exact softmax divide -> tight tolerance vs the f32 reference.
    assert jnp.allclose(out, ref, atol=1e-4, rtol=1e-4), "mismatch vs reference"

    print("KERNEL_OK")
</pallas_src>

<mosaic_0001>
module attributes {stable_mosaic.version = 11 : i64} {
  func.func @_mha_fused_kernel(%arg0: memref<48x32xf32, #tpu.memory_space<vmem>>, %arg1: memref<32x32xf32, #tpu.memory_space<vmem>>, %arg2: memref<32x32xf32, #tpu.memory_space<vmem>>, %arg3: memref<2x8x32xf32, #tpu.memory_space<vmem>>) attributes {dimension_semantics = [], scalar_prefetch = 0 : i64, scratch_operands = 0 : i64, tpu.core_type = #tpu.core_type<tc>} {
    %c0 = arith.constant 0 : index
    %c0_0 = arith.constant 0 : index
    %0 = vector.load %arg1[%c0, %c0_0] : memref<32x32xf32, #tpu.memory_space<vmem>>, vector<32x32xf32>
    %c0_1 = arith.constant 0 : index
    %c0_2 = arith.constant 0 : index
    %1 = vector.load %arg2[%c0_1, %c0_2] : memref<32x32xf32, #tpu.memory_space<vmem>>, vector<32x32xf32>
    %c0_3 = arith.constant 0 : index
    %c0_4 = arith.constant 0 : index
    %2 = vector.load %arg0[%c0_3, %c0_4] : memref<48x32xf32, #tpu.memory_space<vmem>>, vector<48x32xf32>
    %cst = arith.constant dense<0.000000e+00> : vector<48x32xf32>
    %3 = tpu.matmul %2, %0, %cst {dimension_numbers = #tpu.dot_dimension_numbers<[1], [1], [0], [0], [0, 0, 1, 0], [], []>} : vector<48x32xf32>, vector<32x32xf32>, vector<48x32xf32> -> vector<48x32xf32>
    %4 = vector.extract_strided_slice %3 {offsets = [0, 0], sizes = [16, 32], strides = [1, 1]} : vector<48x32xf32> to vector<16x32xf32>
    %cst_5 = arith.constant 0.353553385 : f32
    %5 = vector.broadcast %cst_5 : f32 to vector<16x32xf32>
    %6 = arith.mulf %4, %5 : vector<16x32xf32>
    %7 = vector.shape_cast %6 : vector<16x32xf32> to vector<2x8x32xf32>
    %8 = vector.extract_strided_slice %3 {offsets = [16, 0], sizes = [16, 32], strides = [1, 1]} : vector<48x32xf32> to vector<16x32xf32>
    %9 = vector.shape_cast %8 : vector<16x32xf32> to vector<2x8x32xf32>
    %10 = vector.extract_strided_slice %3 {offsets = [32, 0], sizes = [16, 32], strides = [1, 1]} : vector<48x32xf32> to vector<16x32xf32>
    %11 = vector.shape_cast %10 : vector<16x32xf32> to vector<2x8x32xf32>
    %12 = vector.extract_strided_slice %7 {offsets = [0, 0, 0], sizes = [2, 8, 8], strides = [1, 1, 1]} : vector<2x8x32xf32> to vector<2x8x8xf32>
    %13 = vector.extract_strided_slice %9 {offsets = [0, 0, 0], sizes = [2, 8, 8], strides = [1, 1, 1]} : vector<2x8x32xf32> to vector<2x8x8xf32>
    %14 = vector.extract_strided_slice %11 {offsets = [0, 0, 0], sizes = [2, 8, 8], strides = [1, 1, 1]} : vector<2x8x32xf32> to vector<2x8x8xf32>
    "tpu.trace_start"() <{level = 10 : i32, message = "bqd,bkd->bqk"}> : () -> ()
    %cst_6 = arith.constant dense<0.000000e+00> : vector<2x8x8xf32>
    %15 = tpu.matmul %12, %13, %cst_6 {dimension_numbers = #tpu.dot_dimension_numbers<[2], [2], [1], [1], [0, 0, 0, 1, 1, 1], [0], [0]>} : vector<2x8x8xf32>, vector<2x8x8xf32>, vector<2x8x8xf32> -> vector<2x8x8xf32>
    "tpu.trace_stop"() : () -> ()
    %cst_7 = arith.constant dense<0xFF800000> : vector<2x8xf32>
    %16 = vector.multi_reduction <maximumf>, %15, %cst_7 [2] : vector<2x8x8xf32> to vector<2x8xf32>
    %17 = vector.shape_cast %16 : vector<2x8xf32> to vector<2x8x1xf32>
    %18 = vector.broadcast %17 : vector<2x8x1xf32> to vector<2x8x8xf32>
    %19 = arith.subf %15, %18 : vector<2x8x8xf32>
    %20 = math.exp %19 : vector<2x8x8xf32>
    %cst_8 = arith.constant dense<0.000000e+00> : vector<2x8xf32>
    %21 = vector.multi_reduction <add>, %20, %cst_8 [2] : vector<2x8x8xf32> to vector<2x8xf32>
    %22 = vector.shape_cast %21 : vector<2x8xf32> to vector<2x8x1xf32>
    %23 = vector.broadcast %22 : vector<2x8x1xf32> to vector<2x8x8xf32>
    %24 = arith.divf %20, %23 : vector<2x8x8xf32>
    "tpu.trace_start"() <{level = 10 : i32, message = "bqk,bkd->bqd"}> : () -> ()
    %cst_9 = arith.constant dense<0.000000e+00> : vector<2x8x8xf32>
    %25 = tpu.matmul %24, %14, %cst_9 {dimension_numbers = #tpu.dot_dimension_numbers<[2], [1], [1], [2], [0, 0, 0, 1, 1, 2], [0], [0]>} : vector<2x8x8xf32>, vector<2x8x8xf32>, vector<2x8x8xf32> -> vector<2x8x8xf32>
    "tpu.trace_stop"() : () -> ()
    %26 = vector.extract_strided_slice %7 {offsets = [0, 0, 8], sizes = [2, 8, 8], strides = [1, 1, 1]} : vector<2x8x32xf32> to vector<2x8x8xf32>
    %27 = vector.extract_strided_slice %9 {offsets = [0, 0, 8], sizes = [2, 8, 8], strides = [1, 1, 1]} : vector<2x8x32xf32> to vector<2x8x8xf32>
    %28 = vector.extract_strided_slice %11 {offsets = [0, 0, 8], sizes = [2, 8, 8], strides = [1, 1, 1]} : vector<2x8x32xf32> to vector<2x8x8xf32>
    "tpu.trace_start"() <{level = 10 : i32, message = "bqd,bkd->bqk"}> : () -> ()
    %cst_10 = arith.constant dense<0.000000e+00> : vector<2x8x8xf32>
    %29 = tpu.matmul %26, %27, %cst_10 {dimension_numbers = #tpu.dot_dimension_numbers<[2], [2], [1], [1], [0, 0, 0, 1, 1, 1], [0], [0]>} : vector<2x8x8xf32>, vector<2x8x8xf32>, vector<2x8x8xf32> -> vector<2x8x8xf32>
    "tpu.trace_stop"() : () -> ()
    %cst_11 = arith.constant dense<0xFF800000> : vector<2x8xf32>
    %30 = vector.multi_reduction <maximumf>, %29, %cst_11 [2] : vector<2x8x8xf32> to vector<2x8xf32>
    %31 = vector.shape_cast %30 : vector<2x8xf32> to vector<2x8x1xf32>
    %32 = vector.broadcast %31 : vector<2x8x1xf32> to vector<2x8x8xf32>
    %33 = arith.subf %29, %32 : vector<2x8x8xf32>
    %34 = math.exp %33 : vector<2x8x8xf32>
    %cst_12 = arith.constant dense<0.000000e+00> : vector<2x8xf32>
    %35 = vector.multi_reduction <add>, %34, %cst_12 [2] : vector<2x8x8xf32> to vector<2x8xf32>
    %36 = vector.shape_cast %35 : vector<2x8xf32> to vector<2x8x1xf32>
    %37 = vector.broadcast %36 : vector<2x8x1xf32> to vector<2x8x8xf32>
    %38 = arith.divf %34, %37 : vector<2x8x8xf32>
    "tpu.trace_start"() <{level = 10 : i32, message = "bqk,bkd->bqd"}> : () -> ()
    %cst_13 = arith.constant dense<0.000000e+00> : vector<2x8x8xf32>
    %39 = tpu.matmul %38, %28, %cst_13 {dimension_numbers = #tpu.dot_dimension_numbers<[2], [1], [1], [2], [0, 0, 0, 1, 1, 2], [0], [0]>} : vector<2x8x8xf32>, vector<2x8x8xf32>, vector<2x8x8xf32> -> vector<2x8x8xf32>
    "tpu.trace_stop"() : () -> ()
    %40 = vector.extract_strided_slice %7 {offsets = [0, 0, 16], sizes = [2, 8, 8], strides = [1, 1, 1]} : vector<2x8x32xf32> to vector<2x8x8xf32>
    %41 = vector.extract_strided_slice %9 {offsets = [0, 0, 16], sizes = [2, 8, 8], strides = [1, 1, 1]} : vector<2x8x32xf32> to vector<2x8x8xf32>
    %42 = vector.extract_strided_slice %11 {offsets = [0, 0, 16], sizes = [2, 8, 8], strides = [1, 1, 1]} : vector<2x8x32xf32> to vector<2x8x8xf32>
    "tpu.trace_start"() <{level = 10 : i32, message = "bqd,bkd->bqk"}> : () -> ()
    %cst_14 = arith.constant dense<0.000000e+00> : vector<2x8x8xf32>
    %43 = tpu.matmul %40, %41, %cst_14 {dimension_numbers = #tpu.dot_dimension_numbers<[2], [2], [1], [1], [0, 0, 0, 1, 1, 1], [0], [0]>} : vector<2x8x8xf32>, vector<2x8x8xf32>, vector<2x8x8xf32> -> vector<2x8x8xf32>
    "tpu.trace_stop"() : () -> ()
    %cst_15 = arith.constant dense<0xFF800000> : vector<2x8xf32>
    %44 = vector.multi_reduction <maximumf>, %43, %cst_15 [2] : vector<2x8x8xf32> to vector<2x8xf32>
    %45 = vector.shape_cast %44 : vector<2x8xf32> to vector<2x8x1xf32>
    %46 = vector.broadcast %45 : vector<2x8x1xf32> to vector<2x8x8xf32>
    %47 = arith.subf %43, %46 : vector<2x8x8xf32>
    %48 = math.exp %47 : vector<2x8x8xf32>
    %cst_16 = arith.constant dense<0.000000e+00> : vector<2x8xf32>
    %49 = vector.multi_reduction <add>, %48, %cst_16 [2] : vector<2x8x8xf32> to vector<2x8xf32>
    %50 = vector.shape_cast %49 : vector<2x8xf32> to vector<2x8x1xf32>
    %51 = vector.broadcast %50 : vector<2x8x1xf32> to vector<2x8x8xf32>
    %52 = arith.divf %48, %51 : vector<2x8x8xf32>
    "tpu.trace_start"() <{level = 10 : i32, message = "bqk,bkd->bqd"}> : () -> ()
    %cst_17 = arith.constant dense<0.000000e+00> : vector<2x8x8xf32>
    %53 = tpu.matmul %52, %42, %cst_17 {dimension_numbers = #tpu.dot_dimension_numbers<[2], [1], [1], [2], [0, 0, 0, 1, 1, 2], [0], [0]>} : vector<2x8x8xf32>, vector<2x8x8xf32>, vector<2x8x8xf32> -> vector<2x8x8xf32>
    "tpu.trace_stop"() : () -> ()
    %54 = vector.extract_strided_slice %7 {offsets = [0, 0, 24], sizes = [2, 8, 8], strides = [1, 1, 1]} : vector<2x8x32xf32> to vector<2x8x8xf32>
    %55 = vector.extract_strided_slice %9 {offsets = [0, 0, 24], sizes = [2, 8, 8], strides = [1, 1, 1]} : vector<2x8x32xf32> to vector<2x8x8xf32>
    %56 = vector.extract_strided_slice %11 {offsets = [0, 0, 24], sizes = [2, 8, 8], strides = [1, 1, 1]} : vector<2x8x32xf32> to vector<2x8x8xf32>
    "tpu.trace_start"() <{level = 10 : i32, message = "bqd,bkd->bqk"}> : () -> ()
    %cst_18 = arith.constant dense<0.000000e+00> : vector<2x8x8xf32>
    %57 = tpu.matmul %54, %55, %cst_18 {dimension_numbers = #tpu.dot_dimension_numbers<[2], [2], [1], [1], [0, 0, 0, 1, 1, 1], [0], [0]>} : vector<2x8x8xf32>, vector<2x8x8xf32>, vector<2x8x8xf32> -> vector<2x8x8xf32>
    "tpu.trace_stop"() : () -> ()
    %cst_19 = arith.constant dense<0xFF800000> : vector<2x8xf32>
    %58 = vector.multi_reduction <maximumf>, %57, %cst_19 [2] : vector<2x8x8xf32> to vector<2x8xf32>
    %59 = vector.shape_cast %58 : vector<2x8xf32> to vector<2x8x1xf32>
    %60 = vector.broadcast %59 : vector<2x8x1xf32> to vector<2x8x8xf32>
    %61 = arith.subf %57, %60 : vector<2x8x8xf32>
    %62 = math.exp %61 : vector<2x8x8xf32>
    %cst_20 = arith.constant dense<0.000000e+00> : vector<2x8xf32>
    %63 = vector.multi_reduction <add>, %62, %cst_20 [2] : vector<2x8x8xf32> to vector<2x8xf32>
    %64 = vector.shape_cast %63 : vector<2x8xf32> to vector<2x8x1xf32>
    %65 = vector.broadcast %64 : vector<2x8x1xf32> to vector<2x8x8xf32>
    %66 = arith.divf %62, %65 : vector<2x8x8xf32>
    "tpu.trace_start"() <{level = 10 : i32, message = "bqk,bkd->bqd"}> : () -> ()
    %cst_21 = arith.constant dense<0.000000e+00> : vector<2x8x8xf32>
    %67 = tpu.matmul %66, %56, %cst_21 {dimension_numbers = #tpu.dot_dimension_numbers<[2], [1], [1], [2], [0, 0, 0, 1, 1, 2], [0], [0]>} : vector<2x8x8xf32>, vector<2x8x8xf32>, vector<2x8x8xf32> -> vector<2x8x8xf32>
    "tpu.trace_stop"() : () -> ()
    %68 = tpu.concatenate %25, %39, %53, %67 in 2 : vector<2x8x8xf32>, vector<2x8x8xf32>, vector<2x8x8xf32>, vector<2x8x8xf32> -> vector<2x8x32xf32>
    %69 = vector.shape_cast %68 : vector<2x8x32xf32> to vector<16x32xf32>
    %cst_22 = arith.constant dense<0.000000e+00> : vector<16x32xf32>
    %70 = tpu.matmul %69, %1, %cst_22 {dimension_numbers = #tpu.dot_dimension_numbers<[1], [1], [0], [0], [0, 0, 1, 0], [], []>} : vector<16x32xf32>, vector<32x32xf32>, vector<16x32xf32> -> vector<16x32xf32>
    %71 = vector.shape_cast %70 : vector<16x32xf32> to vector<2x8x32xf32>
    %c0_23 = arith.constant 0 : index
    %c0_24 = arith.constant 0 : index
    %c0_25 = arith.constant 0 : index
    %72 = vector.load %arg3[%c0_23, %c0_24, %c0_25] : memref<2x8x32xf32, #tpu.memory_space<vmem>>, vector<2x8x32xf32>
    tpu.vector_store %arg3[%c0_23, %c0_24, %c0_25], %71 {strides = array<i32>} : memref<2x8x32xf32, #tpu.memory_space<vmem>>, vector<2x8x32xf32>,
    return
  }
}

</mosaic_0001>

<llo_original>
// kernel: multi_head_attention.1
$region0: #{multi_head_attention.1}
  #allocation0 [shape = 'u32[]', space=smem, size = 0x4, offset = 0x4, fixed_abs, tag = 'smem constant byte address 0x4 - core index']
  #allocation1 [shape = 'u32[144,128]{1,0:T(1,128)}', space=vmem, size = 0x12000, scoped, tag = 'internal scratch']
  %s0 = inlined_call_operand.vmem [shape: f32[48,32], index: 0, kind: input, shape index: {}]
  %s1 = inlined_call_operand.vmem [shape: f32[32,32], index: 1, kind: input, shape index: {}]
  %s2 = inlined_call_operand.vmem [shape: f32[32,32], index: 2, kind: input, shape index: {}]
  %s3 = inlined_call_operand.hbm [shape: f32[2,8,32], index: 3, kind: output, shape index: {}]
  %s4 = sld [smem:[#allocation0]]
  $region22: #{multi_head_attention.1} parent=0
    _
  %s6 = ssub.s32 1, %s4
  %s7 = scalar_select 0, %s6, %s4
  $region1: #{multi_head_attention.1} parent=0
    #allocation2 [shape = 'u8[8192]{0}', space=vmem, size = 0x2000, scoped, tag = 'output window, operand 0, single buffered']
    #allocation3 [shape = 's32[1]{0}', space=sflag, size = 0x4, scoped, tag = 'scoped memory for multi_head_attention.1']
    %8 = vsyncpa [#allocation3], 0
    // Predicated region
    $region2: #{multi_head_attention.1} parent=1 // pred_check
      _
    $region3: #{multi_head_attention.1} parent=1 // pred_check_branch
      %10 = sbr.rel (0) target = $region5
    $region4: #{multi_head_attention.1} parent=1 // pred_region
      _
    $region5: #{multi_head_attention.1} parent=1 // pred_fallthru
      _
    // Predicated region
    $region6: #{multi_head_attention.1} parent=1 // pred_check
      _
    $region7: #{multi_head_attention.1} parent=1 // pred_check_branch
      %12 = sbr.rel (0) target = $region9
    $region8: #{multi_head_attention.1} parent=1 // pred_region
      _
    $region9: #{multi_head_attention.1} parent=1 // pred_fallthru
      _
    // Predicated region
    $region10: #{multi_head_attention.1} parent=1 // pred_check
      _
    $region11: #{multi_head_attention.1} parent=1 // pred_check_branch
      %14 = sbr.rel (0) target = $region13
    $region12: #{multi_head_attention.1} parent=1 // pred_region
      _
    $region13: #{multi_head_attention.1} parent=1 // pred_fallthru
      _
    %v15 = vld [vmem:[%s1] sm:$0xff]
    %v16 = vld [vmem:[%s1 + $0x8] sm:$0xff]
    %v17 = vld [vmem:[%s1 + $0x10] sm:$0xff]
    %v18 = vld [vmem:[%s1 + $0x18] sm:$0xff]
    %v19 = vld [vmem:[%s2] sm:$0xff]
    %v20 = vld [vmem:[%s2 + $0x8] sm:$0xff]
    %v21 = vld [vmem:[%s2 + $0x10] sm:$0xff]
    %v22 = vld [vmem:[%s2 + $0x18] sm:$0xff]
    %v23 = vld [vmem:[%s0] sm:$0xff]
    %v24 = vld [vmem:[%s0 + $0x8] sm:$0xff]
    %v25 = vld [vmem:[%s0 + $0x10] sm:$0xff]
    %v26 = vld [vmem:[%s0 + $0x18] sm:$0xff]
    %v27 = vld [vmem:[%s0 + $0x20] sm:$0xff]
    %v28 = vld [vmem:[%s0 + $0x28] sm:$0xff]
    %vm29 = vcmask 261120
    %v31 = vsel %vm29, %v23, 0
    %v34 = vsel %vm29, %v24, 0
    %v37 = vsel %vm29, %v25, 0
    %v40 = vsel %vm29, %v26, 0
    %v43 = vsel %vm29, %v27, 0
    %v46 = vsel %vm29, %v28, 0
    %v49 = vsel %vm29, %v15, 0
    %v52 = vsel %vm29, %v16, 0
    %v55 = vsel %vm29, %v17, 0
    %v58 = vsel %vm29, %v18, 0
    %60 = vmatprep.subr.mxu0 0.0
    %61 = vmatpush1.xpose.msra.mxu0 %v49
    %62 = vmatprep.subr.mxu0 0.0
    %63 = vmatpush1.xpose.msra.mxu0 %v52
    %64 = vmatprep.subr.mxu0 0.0
    %65 = vmatpush1.xpose.msra.mxu0 %v55
    %66 = vmatprep.subr.mxu0 0.0
    %67 = vmatpush1.xpose.msra.mxu0 %v58
    %68 = vmatprep.subr.mxu0 0.0
    %69 = vmatpush1.xpose.msra.mxu0 0.0
    %70 = vmatprep.subr.mxu0 0.0
    %71 = vmatpush1.xpose.msra.mxu0 0.0
    %72 = vmatprep.subr.mxu0 0.0
    %73 = vmatpush1.xpose.msra.mxu0 0.0
    %74 = vmatprep.subr.mxu0 0.0
    %75 = vmatpush1.xpose.msra.mxu0 0.0
    %76 = vmatprep.subr.mxu0 0.0
    %77 = vmatpush1.xpose.msra.mxu0 0.0
    %78 = vmatprep.subr.mxu0 0.0
    %79 = vmatpush1.xpose.msra.mxu0 0.0
    %80 = vmatprep.subr.mxu0 0.0
    %81 = vmatpush1.xpose.msra.mxu0 0.0
    %82 = vmatprep.subr.mxu0 0.0
    %83 = vmatpush1.xpose.msra.mxu0 0.0
    %84 = vmatprep.subr.mxu0 0.0
    %85 = vmatpush1.xpose.msra.mxu0 0.0
    %86 = vmatprep.subr.mxu0 0.0
    %87 = vmatpush1.xpose.msra.mxu0 0.0
    %88 = vmatprep.subr.mxu0 0.0
    %89 = vmatpush1.xpose.msra.mxu0 0.0
    %90 = vmatprep.subr.mxu0 0.0
    %91 = vmatpush1.xpose.msra.mxu0 0.0
    %92 = vmatprep.subr.mxu0 0.0
    %93 = vmatpush1.xpose.msra.mxu0 0.0
    %94 = vmatprep.subr.mxu0 0.0
    %95 = vmatpush1.xpose.msra.mxu0 0.0
    %96 = vmatprep.subr.mxu0 0.0
    %97 = vmatpush1.xpose.msra.mxu0 0.0
    %98 = vmatprep.subr.mxu0 0.0
    %99 = vmatpush1.xpose.msra.mxu0 0.0
    %100 = vmatprep.subr.mxu0 0.0
    %101 = vmatpush1.xpose.msra.mxu0 0.0
    %102 = vmatprep.subr.mxu0 0.0
    %103 = vmatpush1.xpose.msra.mxu0 0.0
    %104 = vmatprep.subr.mxu0 0.0
    %105 = vmatpush1.xpose.msra.mxu0 0.0
    %106 = vmatprep.subr.mxu0 0.0
    %107 = vmatpush1.xpose.msra.mxu0 0.0
    %108 = vmatprep.subr.mxu0 0.0
    %109 = vmatpush1.xpose.msra.mxu0 0.0
    %110 = vmatprep.subr.mxu0 0.0
    %111 = vmatpush1.xpose.msra.mxu0 0.0
    %112 = vmatprep.subr.mxu0 0.0
    %113 = vmatpush1.xpose.msra.mxu0 0.0
    %114 = vmatprep.subr.mxu0 0.0
    %115 = vmatpush1.xpose.msra.mxu0 0.0
    %116 = vmatprep.subr.mxu0 0.0
    %117 = vmatpush1.xpose.msra.mxu0 0.0
    %118 = vmatprep.subr.mxu0 0.0
    %119 = vmatpush1.xpose.msra.mxu0 0.0
    %120 = vmatprep.subr.mxu0 0.0
    %121 = vmatpush1.xpose.msra.mxu0 0.0
    %122 = vmatprep.subr.mxu0 0.0
    %123 = vmatpush1.xpose.msra.mxu0 0.0
    %124 = vmatprep.mubr.f32.mxu0 0.0
    %125 = vmatmul.mubr.f32.gmra.mrb[0].mxu0 %v31
    %v126 = vpop.f32.mrb[0].mxu0
    %v127 = vadd.f32 0.0, %v126
    %v128 = vpop.f32.mrb[0].mxu0
    %129 = vmatprep.mubr.f32.mxu0 0.0
    %130 = vmatmul.mubr.f32.gmra.mrb[0].mxu0 %v34
    %v131 = vpop.f32.mrb[0].mxu0
    %v132 = vadd.f32 0.0, %v131
    %v133 = vpop.f32.mrb[0].mxu0
    %134 = vmatprep.mubr.f32.mxu0 0.0
    %135 = vmatmul.mubr.f32.gmra.mrb[0].mxu0 %v37
    %v136 = vpop.f32.mrb[0].mxu0
    %v137 = vadd.f32 0.0, %v136
    %v138 = vpop.f32.mrb[0].mxu0
    %139 = vmatprep.mubr.f32.mxu0 0.0
    %140 = vmatmul.mubr.f32.gmra.mrb[0].mxu0 %v40
    %v141 = vpop.f32.mrb[0].mxu0
    %v142 = vadd.f32 0.0, %v141
    %v143 = vpop.f32.mrb[0].mxu0
    %144 = vmatprep.mubr.f32.mxu0 0.0
    %145 = vmatmul.mubr.f32.gmra.mrb[0].mxu0 %v43
    %v146 = vpop.f32.mrb[0].mxu0
    %v147 = vadd.f32 0.0, %v146
    %v148 = vpop.f32.mrb[0].mxu0
    %149 = vmatprep.mubr.f32.mxu0 0.0
    %150 = vmatmul.mubr.f32.gmra.mrb[0].mxu0 %v46
    %v151 = vpop.f32.mrb[0].mxu0
    %v152 = vadd.f32 0.0, %v151
    %v153 = vpop.f32.mrb[0].mxu0
    %154 = vdwg.mxu0
    %v155 = vmul.f32 %v127, 0.35355338
    %v156 = vmul.f32 %v132, 0.35355338
    %vm157 = vcmask 64512
    %v159 = vsel %vm157, %v155, 0
    %v162 = vsel %vm157, %v137, 0
    %164 = vmatprep.subr.mxu0 0.0
    %165 = vmatpush1.xpose.msra.mxu0 %v162
    %166 = vmatprep.subr.mxu0 0.0
    %167 = vmatpush1.xpose.msra.mxu0 0.0
    %168 = vmatprep.subr.mxu0 0.0
    %169 = vmatpush1.xpose.msra.mxu0 0.0
    %170 = vmatprep.subr.mxu0 0.0
    %171 = vmatpush1.xpose.msra.mxu0 0.0
    %172 = vmatprep.subr.mxu0 0.0
    %173 = vmatpush1.xpose.msra.mxu0 0.0
    %174 = vmatprep.subr.mxu0 0.0
    %175 = vmatpush1.xpose.msra.mxu0 0.0
    %176 = vmatprep.subr.mxu0 0.0
    %177 = vmatpush1.xpose.msra.mxu0 0.0
    %178 = vmatprep.subr.mxu0 0.0
    %179 = vmatpush1.xpose.msra.mxu0 0.0
    %180 = vmatprep.subr.mxu0 0.0
    %181 = vmatpush1.xpose.msra.mxu0 0.0
    %182 = vmatprep.subr.mxu0 0.0
    %183 = vmatpush1.xpose.msra.mxu0 0.0
    %184 = vmatprep.subr.mxu0 0.0
    %185 = vmatpush1.xpose.msra.mxu0 0.0
    %186 = vmatprep.subr.mxu0 0.0
    %187 = vmatpush1.xpose.msra.mxu0 0.0
    %188 = vmatprep.subr.mxu0 0.0
    %189 = vmatpush1.xpose.msra.mxu0 0.0
    %190 = vmatprep.subr.mxu0 0.0
    %191 = vmatpush1.xpose.msra.mxu0 0.0
    %192 = vmatprep.subr.mxu0 0.0
    %193 = vmatpush1.xpose.msra.mxu0 0.0
    %194 = vmatprep.subr.mxu0 0.0
    %195 = vmatpush1.xpose.msra.mxu0 0.0
    %196 = vmatprep.subr.mxu0 0.0
    %197 = vmatpush1.xpose.msra.mxu0 0.0
    %198 = vmatprep.subr.mxu0 0.0
    %199 = vmatpush1.xpose.msra.mxu0 0.0
    %200 = vmatprep.subr.mxu0 0.0
    %201 = vmatpush1.xpose.msra.mxu0 0.0
    %202 = vmatprep.subr.mxu0 0.0
    %203 = vmatpush1.xpose.msra.mxu0 0.0
    %204 = vmatprep.subr.mxu0 0.0
    %205 = vmatpush1.xpose.msra.mxu0 0.0
    %206 = vmatprep.subr.mxu0 0.0
    %207 = vmatpush1.xpose.msra.mxu0 0.0
    %208 = vmatprep.subr.mxu0 0.0
    %209 = vmatpush1.xpose.msra.mxu0 0.0
    %210 = vmatprep.subr.mxu0 0.0
    %211 = vmatpush1.xpose.msra.mxu0 0.0
    %212 = vmatprep.subr.mxu0 0.0
    %213 = vmatpush1.xpose.msra.mxu0 0.0
    %214 = vmatprep.subr.mxu0 0.0
    %215 = vmatpush1.xpose.msra.mxu0 0.0
    %216 = vmatprep.subr.mxu0 0.0
    %217 = vmatpush1.xpose.msra.mxu0 0.0
    %218 = vmatprep.subr.mxu0 0.0
    %219 = vmatpush1.xpose.msra.mxu0 0.0
    %220 = vmatprep.subr.mxu0 0.0
    %221 = vmatpush1.xpose.msra.mxu0 0.0
    %222 = vmatprep.subr.mxu0 0.0
    %223 = vmatpush1.xpose.msra.mxu0 0.0
    %224 = vmatprep.subr.mxu0 0.0
    %225 = vmatpush1.xpose.msra.mxu0 0.0
    %226 = vmatprep.subr.mxu0 0.0
    %227 = vmatpush1.xpose.msra.mxu0 0.0
    %228 = vmatprep.mubr.f32.mxu0 0.0
    %229 = vmatmul.mubr.f32.gmra.mrb[0].mxu0 %v159
    %v230 = vpop.f32.mrb[0].mxu0
    %v231 = vadd.f32 0.0, %v230
    %v232 = vpop.f32.mrb[0].mxu0
    %233 = vdwg.mxu0
    %v235 = vsel %vm157, %v156, 0
    %v238 = vsel %vm157, %v142, 0
    %240 = vmatprep.subr.mxu0 0.0
    %241 = vmatpush1.xpose.msra.mxu0 %v238
    %242 = vmatprep.subr.mxu0 0.0
    %243 = vmatpush1.xpose.msra.mxu0 0.0
    %244 = vmatprep.subr.mxu0 0.0
    %245 = vmatpush1.xpose.msra.mxu0 0.0
    %246 = vmatprep.subr.mxu0 0.0
    %247 = vmatpush1.xpose.msra.mxu0 0.0
    %248 = vmatprep.subr.mxu0 0.0
    %249 = vmatpush1.xpose.msra.mxu0 0.0
    %250 = vmatprep.subr.mxu0 0.0
    %251 = vmatpush1.xpose.msra.mxu0 0.0
    %252 = vmatprep.subr.mxu0 0.0
    %253 = vmatpush1.xpose.msra.mxu0 0.0
    %254 = vmatprep.subr.mxu0 0.0
    %255 = vmatpush1.xpose.msra.mxu0 0.0
    %256 = vmatprep.subr.mxu0 0.0
    %257 = vmatpush1.xpose.msra.mxu0 0.0
    %258 = vmatprep.subr.mxu0 0.0
    %259 = vmatpush1.xpose.msra.mxu0 0.0
    %260 = vmatprep.subr.mxu0 0.0
    %261 = vmatpush1.xpose.msra.mxu0 0.0
    %262 = vmatprep.subr.mxu0 0.0
    %263 = vmatpush1.xpose.msra.mxu0 0.0
    %264 = vmatprep.subr.mxu0 0.0
    %265 = vmatpush1.xpose.msra.mxu0 0.0
    %266 = vmatprep.subr.mxu0 0.0
    %267 = vmatpush1.xpose.msra.mxu0 0.0
    %268 = vmatprep.subr.mxu0 0.0
    %269 = vmatpush1.xpose.msra.mxu0 0.0
    %270 = vmatprep.subr.mxu0 0.0
    %271 = vmatpush1.xpose.msra.mxu0 0.0
    %272 = vmatprep.subr.mxu0 0.0
    %273 = vmatpush1.xpose.msra.mxu0 0.0
    %274 = vmatprep.subr.mxu0 0.0
    %275 = vmatpush1.xpose.msra.mxu0 0.0
    %276 = vmatprep.subr.mxu0 0.0
    %277 = vmatpush1.xpose.msra.mxu0 0.0
    %278 = vmatprep.subr.mxu0 0.0
    %279 = vmatpush1.xpose.msra.mxu0 0.0
    %280 = vmatprep.subr.mxu0 0.0
    %281 = vmatpush1.xpose.msra.mxu0 0.0
    %282 = vmatprep.subr.mxu0 0.0
    %283 = vmatpush1.xpose.msra.mxu0 0.0
    %284 = vmatprep.subr.mxu0 0.0
    %285 = vmatpush1.xpose.msra.mxu0 0.0
    %286 = vmatprep.subr.mxu0 0.0
    %287 = vmatpush1.xpose.msra.mxu0 0.0
    %288 = vmatprep.subr.mxu0 0.0
    %289 = vmatpush1.xpose.msra.mxu0 0.0
    %290 = vmatprep.subr.mxu0 0.0
    %291 = vmatpush1.xpose.msra.mxu0 0.0
    %292 = vmatprep.subr.mxu0 0.0
    %293 = vmatpush1.xpose.msra.mxu0 0.0
    %294 = vmatprep.subr.mxu0 0.0
    %295 = vmatpush1.xpose.msra.mxu0 0.0
    %296 = vmatprep.subr.mxu0 0.0
    %297 = vmatpush1.xpose.msra.mxu0 0.0
    %298 = vmatprep.subr.mxu0 0.0
    %299 = vmatpush1.xpose.msra.mxu0 0.0
    %300 = vmatprep.subr.mxu0 0.0
    %301 = vmatpush1.xpose.msra.mxu0 0.0
    %302 = vmatprep.subr.mxu0 0.0
    %303 = vmatpush1.xpose.msra.mxu0 0.0
    %304 = vmatprep.mubr.f32.mxu0 0.0
    %305 = vmatmul.mubr.f32.gmra.mrb[0].mxu0 %v235
    %v306 = vpop.f32.mrb[0].mxu0
    %v307 = vadd.f32 0.0, %v306
    %v308 = vpop.f32.mrb[0].mxu0
    %309 = vdwg.mxu0
    %v310 = vsel %vm157, %v231, -inf
    %311 = vmax.xlane.f32.xlu0 %v310
    %v312 = vpop.xlane.xlu0 %311
    %v313 = vsel %vm157, %v307, -inf
    %314 = vmax.xlane.f32.xlu0 %v313
    %v315 = vpop.xlane.xlu0 %314
    %v316 = vsub.f32 %v231, %v312
    %v317 = vsub.f32 %v307, %v315
    %v318 = vmul.f32 %v316, 1.442695
    %v319 = vpow.pop %v318
    %v320 = vmul.f32 %v317, 1.442695
    %v321 = vpow.pop %v320
    %v322 = vsel %vm157, %v319, 0.0
    %323 = vadd.xlane.f32.xlu0 %v322
    %v324 = vpop.xlane.xlu0 %323
    %v325 = vsel %vm157, %v321, 0.0
    %326 = vadd.xlane.f32.xlu0 %v325
    %v327 = vpop.xlane.xlu0 %326
    %v328 = vrcp.pop %v324
    %v329 = vmul.f32 %v319, %v328
    %v330 = vrcp.pop %v327
    %v331 = vmul.f32 %v321, %v330
    %v333 = vsel %vm157, %v329, 0
    %335 = vmatprep.subr.mxu0 0.0
    %336 = vmatpush1.msra.mxu0 %v147
    %337 = vmatprep.subr.mxu0 0.0
    %338 = vmatpush1.msra.mxu0 0.0
    %339 = vmatprep.subr.mxu0 0.0
    %340 = vmatpush1.msra.mxu0 0.0
    %341 = vmatprep.subr.mxu0 0.0
    %342 = vmatpush1.msra.mxu0 0.0
    %343 = vmatprep.subr.mxu0 0.0
    %344 = vmatpush1.msra.mxu0 0.0
    %345 = vmatprep.subr.mxu0 0.0
    %346 = vmatpush1.msra.mxu0 0.0
    %347 = vmatprep.subr.mxu0 0.0
    %348 = vmatpush1.msra.mxu0 0.0
    %349 = vmatprep.subr.mxu0 0.0
    %350 = vmatpush1.msra.mxu0 0.0
    %351 = vmatprep.subr.mxu0 0.0
    %352 = vmatpush1.msra.mxu0 0.0
    %353 = vmatprep.subr.mxu0 0.0
    %354 = vmatpush1.msra.mxu0 0.0
    %355 = vmatprep.subr.mxu0 0.0
    %356 = vmatpush1.msra.mxu0 0.0
    %357 = vmatprep.subr.mxu0 0.0
    %358 = vmatpush1.msra.mxu0 0.0
    %359 = vmatprep.subr.mxu0 0.0
    %360 = vmatpush1.msra.mxu0 0.0
    %361 = vmatprep.subr.mxu0 0.0
    %362 = vmatpush1.msra.mxu0 0.0
    %363 = vmatprep.subr.mxu0 0.0
    %364 = vmatpush1.msra.mxu0 0.0
    %365 = vmatprep.subr.mxu0 0.0
    %366 = vmatpush1.msra.mxu0 0.0
    %367 = vmatprep.subr.mxu0 0.0
    %368 = vmatpush1.msra.mxu0 0.0
    %369 = vmatprep.subr.mxu0 0.0
    %370 = vmatpush1.msra.mxu0 0.0
    %371 = vmatprep.subr.mxu0 0.0
    %372 = vmatpush1.msra.mxu0 0.0
    %373 = vmatprep.subr.mxu0 0.0
    %374 = vmatpush1.msra.mxu0 0.0
    %375 = vmatprep.subr.mxu0 0.0
    %376 = vmatpush1.msra.mxu0 0.0
    %377 = vmatprep.subr.mxu0 0.0
    %378 = vmatpush1.msra.mxu0 0.0
    %379 = vmatprep.subr.mxu0 0.0
    %380 = vmatpush1.msra.mxu0 0.0
    %381 = vmatprep.subr.mxu0 0.0
    %382 = vmatpush1.msra.mxu0 0.0
    %383 = vmatprep.subr.mxu0 0.0
    %384 = vmatpush1.msra.mxu0 0.0
    %385 = vmatprep.subr.mxu0 0.0
    %386 = vmatpush1.msra.mxu0 0.0
    %387 = vmatprep.subr.mxu0 0.0
    %388 = vmatpush1.msra.mxu0 0.0
    %389 = vmatprep.subr.mxu0 0.0
    %390 = vmatpush1.msra.mxu0 0.0
    %391 = vmatprep.subr.mxu0 0.0
    %392 = vmatpush1.msra.mxu0 0.0
    %393 = vmatprep.subr.mxu0 0.0
    %394 = vmatpush1.msra.mxu0 0.0
    %395 = vmatprep.subr.mxu0 0.0
    %396 = vmatpush1.msra.mxu0 0.0
    %397 = vmatprep.subr.mxu0 0.0
    %398 = vmatpush1.msra.mxu0 0.0
    %399 = vmatprep.mubr.f32.mxu0 0.0
    %400 = vmatmul.mubr.f32.gmra.mrb[0].mxu0 %v333
    %v401 = vpop.f32.mrb[0].mxu0
    %v402 = vadd.f32 0.0, %v401
    %v403 = vpop.f32.mrb[0].mxu0
    %404 = vdwg.mxu0
    %v406 = vsel %vm157, %v331, 0
    %408 = vmatprep.subr.mxu0 0.0
    %409 = vmatpush1.msra.mxu0 %v152
    %410 = vmatprep.subr.mxu0 0.0
    %411 = vmatpush1.msra.mxu0 0.0
    %412 = vmatprep.subr.mxu0 0.0
    %413 = vmatpush1.msra.mxu0 0.0
    %414 = vmatprep.subr.mxu0 0.0
    %415 = vmatpush1.msra.mxu0 0.0
    %416 = vmatprep.subr.mxu0 0.0
    %417 = vmatpush1.msra.mxu0 0.0
    %418 = vmatprep.subr.mxu0 0.0
    %419 = vmatpush1.msra.mxu0 0.0
    %420 = vmatprep.subr.mxu0 0.0
    %421 = vmatpush1.msra.mxu0 0.0
    %422 = vmatprep.subr.mxu0 0.0
    %423 = vmatpush1.msra.mxu0 0.0
    %424 = vmatprep.subr.mxu0 0.0
    %425 = vmatpush1.msra.mxu0 0.0
    %426 = vmatprep.subr.mxu0 0.0
    %427 = vmatpush1.msra.mxu0 0.0
    %428 = vmatprep.subr.mxu0 0.0
    %429 = vmatpush1.msra.mxu0 0.0
    %430 = vmatprep.subr.mxu0 0.0
    %431 = vmatpush1.msra.mxu0 0.0
    %432 = vmatprep.subr.mxu0 0.0
    %433 = vmatpush1.msra.mxu0 0.0
    %434 = vmatprep.subr.mxu0 0.0
    %435 = vmatpush1.msra.mxu0 0.0
    %436 = vmatprep.subr.mxu0 0.0
    %437 = vmatpush1.msra.mxu0 0.0
    %438 = vmatprep.subr.mxu0 0.0
    %439 = vmatpush1.msra.mxu0 0.0
    %440 = vmatprep.subr.mxu0 0.0
    %441 = vmatpush1.msra.mxu0 0.0
    %442 = vmatprep.subr.mxu0 0.0
    %443 = vmatpush1.msra.mxu0 0.0
    %444 = vmatprep.subr.mxu0 0.0
    %445 = vmatpush1.msra.mxu0 0.0
    %446 = vmatprep.subr.mxu0 0.0
    %447 = vmatpush1.msra.mxu0 0.0
    %448 = vmatprep.subr.mxu0 0.0
    %449 = vmatpush1.msra.mxu0 0.0
    %450 = vmatprep.subr.mxu0 0.0
    %451 = vmatpush1.msra.mxu0 0.0
    %452 = vmatprep.subr.mxu0 0.0
    %453 = vmatpush1.msra.mxu0 0.0
    %454 = vmatprep.subr.mxu0 0.0
    %455 = vmatpush1.msra.mxu0 0.0
    %456 = vmatprep.subr.mxu0 0.0
    %457 = vmatpush1.msra.mxu0 0.0
    %458 = vmatprep.subr.mxu0 0.0
    %459 = vmatpush1.msra.mxu0 0.0
    %460 = vmatprep.subr.mxu0 0.0
    %461 = vmatpush1.msra.mxu0 0.0
    %462 = vmatprep.subr.mxu0 0.0
    %463 = vmatpush1.msra.mxu0 0.0
    %464 = vmatprep.subr.mxu0 0.0
    %465 = vmatpush1.msra.mxu0 0.0
    %466 = vmatprep.subr.mxu0 0.0
    %467 = vmatpush1.msra.mxu0 0.0
    %468 = vmatprep.subr.mxu0 0.0
    %469 = vmatpush1.msra.mxu0 0.0
    %470 = vmatprep.subr.mxu0 0.0
    %471 = vmatpush1.msra.mxu0 0.0
    %472 = vmatprep.mubr.f32.mxu0 0.0
    %473 = vmatmul.mubr.f32.gmra.mrb[0].mxu0 %v406
    %v474 = vpop.f32.mrb[0].mxu0
    %v475 = vadd.f32 0.0, %v474
    %v476 = vpop.f32.mrb[0].mxu0
    %477 = vdwg.mxu0
    %478 = vrot.lane.b32.xlu0 %v155, 120
    %v479 = vpop.permute.xlu0 %478
    %480 = vrot.lane.b32.xlu0 %v137, 120
    %v481 = vpop.permute.xlu0 %480
    %v482 = vsel %vm157, %v479, 0
    %v484 = vsel %vm157, %v481, 0
    %486 = vmatprep.subr.mxu0 0.0
    %487 = vmatpush1.xpose.msra.mxu0 %v484
    %488 = vmatprep.subr.mxu0 0.0
    %489 = vmatpush1.xpose.msra.mxu0 0.0
    %490 = vmatprep.subr.mxu0 0.0
    %491 = vmatpush1.xpose.msra.mxu0 0.0
    %492 = vmatprep.subr.mxu0 0.0
    %493 = vmatpush1.xpose.msra.mxu0 0.0
    %494 = vmatprep.subr.mxu0 0.0
    %495 = vmatpush1.xpose.msra.mxu0 0.0
    %496 = vmatprep.subr.mxu0 0.0
    %497 = vmatpush1.xpose.msra.mxu0 0.0
    %498 = vmatprep.subr.mxu0 0.0
    %499 = vmatpush1.xpose.msra.mxu0 0.0
    %500 = vmatprep.subr.mxu0 0.0
    %501 = vmatpush1.xpose.msra.mxu0 0.0
    %502 = vmatprep.subr.mxu0 0.0
    %503 = vmatpush1.xpose.msra.mxu0 0.0
    %504 = vmatprep.subr.mxu0 0.0
    %505 = vmatpush1.xpose.msra.mxu0 0.0
    %506 = vmatprep.subr.mxu0 0.0
    %507 = vmatpush1.xpose.msra.mxu0 0.0
    %508 = vmatprep.subr.mxu0 0.0
    %509 = vmatpush1.xpose.msra.mxu0 0.0
    %510 = vmatprep.subr.mxu0 0.0
    %511 = vmatpush1.xpose.msra.mxu0 0.0
    %512 = vmatprep.subr.mxu0 0.0
    %513 = vmatpush1.xpose.msra.mxu0 0.0
    %514 = vmatprep.subr.mxu0 0.0
    %515 = vmatpush1.xpose.msra.mxu0 0.0
    %516 = vmatprep.subr.mxu0 0.0
    %517 = vmatpush1.xpose.msra.mxu0 0.0
    %518 = vmatprep.subr.mxu0 0.0
    %519 = vmatpush1.xpose.msra.mxu0 0.0
    %520 = vmatprep.subr.mxu0 0.0
    %521 = vmatpush1.xpose.msra.mxu0 0.0
    %522 = vmatprep.subr.mxu0 0.0
    %523 = vmatpush1.xpose.msra.mxu0 0.0
    %524 = vmatprep.subr.mxu0 0.0
    %525 = vmatpush1.xpose.msra.mxu0 0.0
    %526 = vmatprep.subr.mxu0 0.0
    %527 = vmatpush1.xpose.msra.mxu0 0.0
    %528 = vmatprep.subr.mxu0 0.0
    %529 = vmatpush1.xpose.msra.mxu0 0.0
    %530 = vmatprep.subr.mxu0 0.0
    %531 = vmatpush1.xpose.msra.mxu0 0.0
    %532 = vmatprep.subr.mxu0 0.0
    %533 = vmatpush1.xpose.msra.mxu0 0.0
    %534 = vmatprep.subr.mxu0 0.0
    %535 = vmatpush1.xpose.msra.mxu0 0.0
    %536 = vmatprep.subr.mxu0 0.0
    %537 = vmatpush1.xpose.msra.mxu0 0.0
    %538 = vmatprep.subr.mxu0 0.0
    %539 = vmatpush1.xpose.msra.mxu0 0.0
    %540 = vmatprep.subr.mxu0 0.0
    %541 = vmatpush1.xpose.msra.mxu0 0.0
    %542 = vmatprep.subr.mxu0 0.0
    %543 = vmatpush1.xpose.msra.mxu0 0.0
    %544 = vmatprep.subr.mxu0 0.0
    %545 = vmatpush1.xpose.msra.mxu0 0.0
    %546 = vmatprep.subr.mxu0 0.0
    %547 = vmatpush1.xpose.msra.mxu0 0.0
    %548 = vmatprep.subr.mxu0 0.0
    %549 = vmatpush1.xpose.msra.mxu0 0.0
    %550 = vmatprep.mubr.f32.mxu0 0.0
    %551 = vmatmul.mubr.f32.gmra.mrb[0].mxu0 %v482
    %v552 = vpop.f32.mrb[0].mxu0
    %v553 = vadd.f32 0.0, %v552
    %v554 = vpop.f32.mrb[0].mxu0
    %555 = vdwg.mxu0
    %556 = vrot.lane.b32.xlu0 %v156, 120
    %v557 = vpop.permute.xlu0 %556
    %558 = vrot.lane.b32.xlu0 %v142, 120
    %v559 = vpop.permute.xlu0 %558
    %v560 = vsel %vm157, %v557, 0
    %v562 = vsel %vm157, %v559, 0
    %564 = vmatprep.subr.mxu0 0.0
    %565 = vmatpush1.xpose.msra.mxu0 %v562
    %566 = vmatprep.subr.mxu0 0.0
    %567 = vmatpush1.xpose.msra.mxu0 0.0
    %568 = vmatprep.subr.mxu0 0.0
    %569 = vmatpush1.xpose.msra.mxu0 0.0
    %570 = vmatprep.subr.mxu0 0.0
    %571 = vmatpush1.xpose.msra.mxu0 0.0
    %572 = vmatprep.subr.mxu0 0.0
    %573 = vmatpush1.xpose.msra.mxu0 0.0
    %574 = vmatprep.subr.mxu0 0.0
    %575 = vmatpush1.xpose.msra.mxu0 0.0
    %576 = vmatprep.subr.mxu0 0.0
    %577 = vmatpush1.xpose.msra.mxu0 0.0
    %578 = vmatprep.subr.mxu0 0.0
    %579 = vmatpush1.xpose.msra.mxu0 0.0
    %580 = vmatprep.subr.mxu0 0.0
    %581 = vmatpush1.xpose.msra.mxu0 0.0
    %582 = vmatprep.subr.mxu0 0.0
    %583 = vmatpush1.xpose.msra.mxu0 0.0
    %584 = vmatprep.subr.mxu0 0.0
    %585 = vmatpush1.xpose.msra.mxu0 0.0
    %586 = vmatprep.subr.mxu0 0.0
    %587 = vmatpush1.xpose.msra.mxu0 0.0
    %588 = vmatprep.subr.mxu0 0.0
    %589 = vmatpush1.xpose.msra.mxu0 0.0
    %590 = vmatprep.subr.mxu0 0.0
    %591 = vmatpush1.xpose.msra.mxu0 0.0
    %592 = vmatprep.subr.mxu0 0.0
    %593 = vmatpush1.xpose.msra.mxu0 0.0
    %594 = vmatprep.subr.mxu0 0.0
    %595 = vmatpush1.xpose.msra.mxu0 0.0
    %596 = vmatprep.subr.mxu0 0.0
    %597 = vmatpush1.xpose.msra.mxu0 0.0
    %598 = vmatprep.subr.mxu0 0.0
    %599 = vmatpush1.xpose.msra.mxu0 0.0
    %600 = vmatprep.subr.mxu0 0.0
    %601 = vmatpush1.xpose.msra.mxu0 0.0
    %602 = vmatprep.subr.mxu0 0.0
    %603 = vmatpush1.xpose.msra.mxu0 0.0
    %604 = vmatprep.subr.mxu0 0.0
    %605 = vmatpush1.xpose.msra.mxu0 0.0
    %606 = vmatprep.subr.mxu0 0.0
    %607 = vmatpush1.xpose.msra.mxu0 0.0
    %608 = vmatprep.subr.mxu0 0.0
    %609 = vmatpush1.xpose.msra.mxu0 0.0
    %610 = vmatprep.subr.mxu0 0.0
    %611 = vmatpush1.xpose.msra.mxu0 0.0
    %612 = vmatprep.subr.mxu0 0.0
    %613 = vmatpush1.xpose.msra.mxu0 0.0
    %614 = vmatprep.subr.mxu0 0.0
    %615 = vmatpush1.xpose.msra.mxu0 0.0
    %616 = vmatprep.subr.mxu0 0.0
    %617 = vmatpush1.xpose.msra.mxu0 0.0
    %618 = vmatprep.subr.mxu0 0.0
    %619 = vmatpush1.xpose.msra.mxu0 0.0
    %620 = vmatprep.subr.mxu0 0.0
    %621 = vmatpush1.xpose.msra.mxu0 0.0
    %622 = vmatprep.subr.mxu0 0.0
    %623 = vmatpush1.xpose.msra.mxu0 0.0
    %624 = vmatprep.subr.mxu0 0.0
    %625 = vmatpush1.xpose.msra.mxu0 0.0
    %626 = vmatprep.subr.mxu0 0.0
    %627 = vmatpush1.xpose.msra.mxu0 0.0
    %628 = vmatprep.mubr.f32.mxu0 0.0
    %629 = vmatmul.mubr.f32.gmra.mrb[0].mxu0 %v560
    %v630 = vpop.f32.mrb[0].mxu0
    %v631 = vadd.f32 0.0, %v630
    %v632 = vpop.f32.mrb[0].mxu0
    %633 = vdwg.mxu0
    %v634 = vsel %vm157, %v553, -inf
    %635 = vmax.xlane.f32.xlu0 %v634
    %v636 = vpop.xlane.xlu0 %635
    %v637 = vsel %vm157, %v631, -inf
    %638 = vmax.xlane.f32.xlu0 %v637
    %v639 = vpop.xlane.xlu0 %638
    %v640 = vsub.f32 %v553, %v636
    %v641 = vsub.f32 %v631, %v639
    %v642 = vmul.f32 %v640, 1.442695
    %v643 = vpow.pop %v642
    %v644 = vmul.f32 %v641, 1.442695
    %v645 = vpow.pop %v644
    %v646 = vsel %vm157, %v643, 0.0
    %647 = vadd.xlane.f32.xlu0 %v646
    %v648 = vpop.xlane.xlu0 %647
    %v649 = vsel %vm157, %v645, 0.0
    %650 = vadd.xlane.f32.xlu0 %v649
    %v651 = vpop.xlane.xlu0 %650
    %v652 = vrcp.pop %v648
    %v653 = vmul.f32 %v643, %v652
    %v654 = vrcp.pop %v651
    %v655 = vmul.f32 %v645, %v654
    %657 = vrot.lane.b32.xlu0 %v147, 120
    %v658 = vpop.permute.xlu0 %657
    %v661 = vsel %vm157, %v653, 0
    %663 = vmatprep.subr.mxu0 0.0
    %664 = vmatpush1.msra.mxu0 %v658
    %665 = vmatprep.subr.mxu0 0.0
    %666 = vmatpush1.msra.mxu0 0.0
    %667 = vmatprep.subr.mxu0 0.0
    %668 = vmatpush1.msra.mxu0 0.0
    %669 = vmatprep.subr.mxu0 0.0
    %670 = vmatpush1.msra.mxu0 0.0
    %671 = vmatprep.subr.mxu0 0.0
    %672 = vmatpush1.msra.mxu0 0.0
    %673 = vmatprep.subr.mxu0 0.0
    %674 = vmatpush1.msra.mxu0 0.0
    %675 = vmatprep.subr.mxu0 0.0
    %676 = vmatpush1.msra.mxu0 0.0
    %677 = vmatprep.subr.mxu0 0.0
    %678 = vmatpush1.msra.mxu0 0.0
    %679 = vmatprep.subr.mxu0 0.0
    %680 = vmatpush1.msra.mxu0 0.0
    %681 = vmatprep.subr.mxu0 0.0
    %682 = vmatpush1.msra.mxu0 0.0
    %683 = vmatprep.subr.mxu0 0.0
    %684 = vmatpush1.msra.mxu0 0.0
    %685 = vmatprep.subr.mxu0 0.0
    %686 = vmatpush1.msra.mxu0 0.0
    %687 = vmatprep.subr.mxu0 0.0
    %688 = vmatpush1.msra.mxu0 0.0
    %689 = vmatprep.subr.mxu0 0.0
    %690 = vmatpush1.msra.mxu0 0.0
    %691 = vmatprep.subr.mxu0 0.0
    %692 = vmatpush1.msra.mxu0 0.0
    %693 = vmatprep.subr.mxu0 0.0
    %694 = vmatpush1.msra.mxu0 0.0
    %695 = vmatprep.subr.mxu0 0.0
    %696 = vmatpush1.msra.mxu0 0.0
    %697 = vmatprep.subr.mxu0 0.0
    %698 = vmatpush1.msra.mxu0 0.0
    %699 = vmatprep.subr.mxu0 0.0
    %700 = vmatpush1.msra.mxu0 0.0
    %701 = vmatprep.subr.mxu0 0.0
    %702 = vmatpush1.msra.mxu0 0.0
    %703 = vmatprep.subr.mxu0 0.0
    %704 = vmatpush1.msra.mxu0 0.0
    %705 = vmatprep.subr.mxu0 0.0
    %706 = vmatpush1.msra.mxu0 0.0
    %707 = vmatprep.subr.mxu0 0.0
    %708 = vmatpush1.msra.mxu0 0.0
    %709 = vmatprep.subr.mxu0 0.0
    %710 = vmatpush1.msra.mxu0 0.0
    %711 = vmatprep.subr.mxu0 0.0
    %712 = vmatpush1.msra.mxu0 0.0
    %713 = vmatprep.subr.mxu0 0.0
    %714 = vmatpush1.msra.mxu0 0.0
    %715 = vmatprep.subr.mxu0 0.0
    %716 = vmatpush1.msra.mxu0 0.0
    %717 = vmatprep.subr.mxu0 0.0
    %718 = vmatpush1.msra.mxu0 0.0
    %719 = vmatprep.subr.mxu0 0.0
    %720 = vmatpush1.msra.mxu0 0.0
    %721 = vmatprep.subr.mxu0 0.0
    %722 = vmatpush1.msra.mxu0 0.0
    %723 = vmatprep.subr.mxu0 0.0
    %724 = vmatpush1.msra.mxu0 0.0
    %725 = vmatprep.subr.mxu0 0.0
    %726 = vmatpush1.msra.mxu0 0.0
    %727 = vmatprep.mubr.f32.mxu0 0.0
    %728 = vmatmul.mubr.f32.gmra.mrb[0].mxu0 %v661
    %v729 = vpop.f32.mrb[0].mxu0
    %v730 = vadd.f32 0.0, %v729
    %v731 = vpop.f32.mrb[0].mxu0
    %732 = vdwg.mxu0
    %734 = vrot.lane.b32.xlu0 %v152, 120
    %v735 = vpop.permute.xlu0 %734
    %v738 = vsel %vm157, %v655, 0
    %740 = vmatprep.subr.mxu0 0.0
    %741 = vmatpush1.msra.mxu0 %v735
    %742 = vmatprep.subr.mxu0 0.0
    %743 = vmatpush1.msra.mxu0 0.0
    %744 = vmatprep.subr.mxu0 0.0
    %745 = vmatpush1.msra.mxu0 0.0
    %746 = vmatprep.subr.mxu0 0.0
    %747 = vmatpush1.msra.mxu0 0.0
    %748 = vmatprep.subr.mxu0 0.0
    %749 = vmatpush1.msra.mxu0 0.0
    %750 = vmatprep.subr.mxu0 0.0
    %751 = vmatpush1.msra.mxu0 0.0
    %752 = vmatprep.subr.mxu0 0.0
    %753 = vmatpush1.msra.mxu0 0.0
    %754 = vmatprep.subr.mxu0 0.0
    %755 = vmatpush1.msra.mxu0 0.0
    %756 = vmatprep.subr.mxu0 0.0
    %757 = vmatpush1.msra.mxu0 0.0
    %758 = vmatprep.subr.mxu0 0.0
    %759 = vmatpush1.msra.mxu0 0.0
    %760 = vmatprep.subr.mxu0 0.0
    %761 = vmatpush1.msra.mxu0 0.0
    %762 = vmatprep.subr.mxu0 0.0
    %763 = vmatpush1.msra.mxu0 0.0
    %764 = vmatprep.subr.mxu0 0.0
    %765 = vmatpush1.msra.mxu0 0.0
    %766 = vmatprep.subr.mxu0 0.0
    %767 = vmatpush1.msra.mxu0 0.0
    %768 = vmatprep.subr.mxu0 0.0
    %769 = vmatpush1.msra.mxu0 0.0
    %770 = vmatprep.subr.mxu0 0.0
    %771 = vmatpush1.msra.mxu0 0.0
    %772 = vmatprep.subr.mxu0 0.0
    %773 = vmatpush1.msra.mxu0 0.0
    %774 = vmatprep.subr.mxu0 0.0
    %775 = vmatpush1.msra.mxu0 0.0
    %776 = vmatprep.subr.mxu0 0.0
    %777 = vmatpush1.msra.mxu0 0.0
    %778 = vmatprep.subr.mxu0 0.0
    %779 = vmatpush1.msra.mxu0 0.0
    %780 = vmatprep.subr.mxu0 0.0
    %781 = vmatpush1.msra.mxu0 0.0
    %782 = vmatprep.subr.mxu0 0.0
    %783 = vmatpush1.msra.mxu0 0.0
    %784 = vmatprep.subr.mxu0 0.0
    %785 = vmatpush1.msra.mxu0 0.0
    %786 = vmatprep.subr.mxu0 0.0
    %787 = vmatpush1.msra.mxu0 0.0
    %788 = vmatprep.subr.mxu0 0.0
    %789 = vmatpush1.msra.mxu0 0.0
    %790 = vmatprep.subr.mxu0 0.0
    %791 = vmatpush1.msra.mxu0 0.0
    %792 = vmatprep.subr.mxu0 0.0
    %793 = vmatpush1.msra.mxu0 0.0
    %794 = vmatprep.subr.mxu0 0.0
    %795 = vmatpush1.msra.mxu0 0.0
    %796 = vmatprep.subr.mxu0 0.0
    %797 = vmatpush1.msra.mxu0 0.0
    %798 = vmatprep.subr.mxu0 0.0
    %799 = vmatpush1.msra.mxu0 0.0
    %800 = vmatprep.subr.mxu0 0.0
    %801 = vmatpush1.msra.mxu0 0.0
    %802 = vmatprep.subr.mxu0 0.0
    %803 = vmatpush1.msra.mxu0 0.0
    %804 = vmatprep.mubr.f32.mxu0 0.0
    %805 = vmatmul.mubr.f32.gmra.mrb[0].mxu0 %v738
    %v806 = vpop.f32.mrb[0].mxu0
    %v807 = vadd.f32 0.0, %v806
    %v808 = vpop.f32.mrb[0].mxu0
    %809 = vdwg.mxu0
    %810 = vrot.lane.b32.xlu0 %v155, 112
    %v811 = vpop.permute.xlu0 %810
    %812 = vrot.lane.b32.xlu0 %v137, 112
    %v813 = vpop.permute.xlu0 %812
    %v814 = vsel %vm157, %v811, 0
    %v816 = vsel %vm157, %v813, 0
    %818 = vmatprep.subr.mxu0 0.0
    %819 = vmatpush1.xpose.msra.mxu0 %v816
    %820 = vmatprep.subr.mxu0 0.0
    %821 = vmatpush1.xpose.msra.mxu0 0.0
    %822 = vmatprep.subr.mxu0 0.0
    %823 = vmatpush1.xpose.msra.mxu0 0.0
    %824 = vmatprep.subr.mxu0 0.0
    %825 = vmatpush1.xpose.msra.mxu0 0.0
    %826 = vmatprep.subr.mxu0 0.0
    %827 = vmatpush1.xpose.msra.mxu0 0.0
    %828 = vmatprep.subr.mxu0 0.0
    %829 = vmatpush1.xpose.msra.mxu0 0.0
    %830 = vmatprep.subr.mxu0 0.0
    %831 = vmatpush1.xpose.msra.mxu0 0.0
    %832 = vmatprep.subr.mxu0 0.0
    %833 = vmatpush1.xpose.msra.mxu0 0.0
    %834 = vmatprep.subr.mxu0 0.0
    %835 = vmatpush1.xpose.msra.mxu0 0.0
    %836 = vmatprep.subr.mxu0 0.0
    %837 = vmatpush1.xpose.msra.mxu0 0.0
    %838 = vmatprep.subr.mxu0 0.0
    %839 = vmatpush1.xpose.msra.mxu0 0.0
    %840 = vmatprep.subr.mxu0 0.0
    %841 = vmatpush1.xpose.msra.mxu0 0.0
    %842 = vmatprep.subr.mxu0 0.0
    %843 = vmatpush1.xpose.msra.mxu0 0.0
    %844 = vmatprep.subr.mxu0 0.0
    %845 = vmatpush1.xpose.msra.mxu0 0.0
    %846 = vmatprep.subr.mxu0 0.0
    %847 = vmatpush1.xpose.msra.mxu0 0.0
    %848 = vmatprep.subr.mxu0 0.0
    %849 = vmatpush1.xpose.msra.mxu0 0.0
    %850 = vmatprep.subr.mxu0 0.0
    %851 = vmatpush1.xpose.msra.mxu0 0.0
    %852 = vmatprep.subr.mxu0 0.0
    %853 = vmatpush1.xpose.msra.mxu0 0.0
    %854 = vmatprep.subr.mxu0 0.0
    %855 = vmatpush1.xpose.msra.mxu0 0.0
    %856 = vmatprep.subr.mxu0 0.0
    %857 = vmatpush1.xpose.msra.mxu0 0.0
    %858 = vmatprep.subr.mxu0 0.0
    %859 = vmatpush1.xpose.msra.mxu0 0.0
    %860 = vmatprep.subr.mxu0 0.0
    %861 = vmatpush1.xpose.msra.mxu0 0.0
    %862 = vmatprep.subr.mxu0 0.0
    %863 = vmatpush1.xpose.msra.mxu0 0.0
    %864 = vmatprep.subr.mxu0 0.0
    %865 = vmatpush1.xpose.msra.mxu0 0.0
    %866 = vmatprep.subr.mxu0 0.0
    %867 = vmatpush1.xpose.msra.mxu0 0.0
    %868 = vmatprep.subr.mxu0 0.0
    %869 = vmatpush1.xpose.msra.mxu0 0.0
    %870 = vmatprep.subr.mxu0 0.0
    %871 = vmatpush1.xpose.msra.mxu0 0.0
    %872 = vmatprep.subr.mxu0 0.0
    %873 = vmatpush1.xpose.msra.mxu0 0.0
    %874 = vmatprep.subr.mxu0 0.0
    %875 = vmatpush1.xpose.msra.mxu0 0.0
    %876 = vmatprep.subr.mxu0 0.0
    %877 = vmatpush1.xpose.msra.mxu0 0.0
    %878 = vmatprep.subr.mxu0 0.0
    %879 = vmatpush1.xpose.msra.mxu0 0.0
    %880 = vmatprep.subr.mxu0 0.0
    %881 = vmatpush1.xpose.msra.mxu0 0.0
    %882 = vmatprep.mubr.f32.mxu0 0.0
    %883 = vmatmul.mubr.f32.gmra.mrb[0].mxu0 %v814
    %v884 = vpop.f32.mrb[0].mxu0
    %v885 = vadd.f32 0.0, %v884
    %v886 = vpop.f32.mrb[0].mxu0
    %887 = vdwg.mxu0
    %888 = vrot.lane.b32.xlu0 %v156, 112
    %v889 = vpop.permute.xlu0 %888
    %890 = vrot.lane.b32.xlu0 %v142, 112
    %v891 = vpop.permute.xlu0 %890
    %v892 = vsel %vm157, %v889, 0
    %v894 = vsel %vm157, %v891, 0
    %896 = vmatprep.subr.mxu0 0.0
    %897 = vmatpush1.xpose.msra.mxu0 %v894
    %898 = vmatprep.subr.mxu0 0.0
    %899 = vmatpush1.xpose.msra.mxu0 0.0
    %900 = vmatprep.subr.mxu0 0.0
    %901 = vmatpush1.xpose.msra.mxu0 0.0
    %902 = vmatprep.subr.mxu0 0.0
    %903 = vmatpush1.xpose.msra.mxu0 0.0
    %904 = vmatprep.subr.mxu0 0.0
    %905 = vmatpush1.xpose.msra.mxu0 0.0
    %906 = vmatprep.subr.mxu0 0.0
    %907 = vmatpush1.xpose.msra.mxu0 0.0
    %908 = vmatprep.subr.mxu0 0.0
    %909 = vmatpush1.xpose.msra.mxu0 0.0
    %910 = vmatprep.subr.mxu0 0.0
    %911 = vmatpush1.xpose.msra.mxu0 0.0
    %912 = vmatprep.subr.mxu0 0.0
    %913 = vmatpush1.xpose.msra.mxu0 0.0
    %914 = vmatprep.subr.mxu0 0.0
    %915 = vmatpush1.xpose.msra.mxu0 0.0
    %916 = vmatprep.subr.mxu0 0.0
    %917 = vmatpush1.xpose.msra.mxu0 0.0
    %918 = vmatprep.subr.mxu0 0.0
    %919 = vmatpush1.xpose.msra.mxu0 0.0
    %920 = vmatprep.subr.mxu0 0.0
    %921 = vmatpush1.xpose.msra.mxu0 0.0
    %922 = vmatprep.subr.mxu0 0.0
    %923 = vmatpush1.xpose.msra.mxu0 0.0
    %924 = vmatprep.subr.mxu0 0.0
    %925 = vmatpush1.xpose.msra.mxu0 0.0
    %926 = vmatprep.subr.mxu0 0.0
    %927 = vmatpush1.xpose.msra.mxu0 0.0
    %928 = vmatprep.subr.mxu0 0.0
    %929 = vmatpush1.xpose.msra.mxu0 0.0
    %930 = vmatprep.subr.mxu0 0.0
    %931 = vmatpush1.xpose.msra.mxu0 0.0
    %932 = vmatprep.subr.mxu0 0.0
    %933 = vmatpush1.xpose.msra.mxu0 0.0
    %934 = vmatprep.subr.mxu0 0.0
    %935 = vmatpush1.xpose.msra.mxu0 0.0
    %936 = vmatprep.subr.mxu0 0.0
    %937 = vmatpush1.xpose.msra.mxu0 0.0
    %938 = vmatprep.subr.mxu0 0.0
    %939 = vmatpush1.xpose.msra.mxu0 0.0
    %940 = vmatprep.subr.mxu0 0.0
    %941 = vmatpush1.xpose.msra.mxu0 0.0
    %942 = vmatprep.subr.mxu0 0.0
    %943 = vmatpush1.xpose.msra.mxu0 0.0
    %944 = vmatprep.subr.mxu0 0.0
    %945 = vmatpush1.xpose.msra.mxu0 0.0
    %946 = vmatprep.subr.mxu0 0.0
    %947 = vmatpush1.xpose.msra.mxu0 0.0
    %948 = vmatprep.subr.mxu0 0.0
    %949 = vmatpush1.xpose.msra.mxu0 0.0
    %950 = vmatprep.subr.mxu0 0.0
    %951 = vmatpush1.xpose.msra.mxu0 0.0
    %952 = vmatprep.subr.mxu0 0.0
    %953 = vmatpush1.xpose.msra.mxu0 0.0
    %954 = vmatprep.subr.mxu0 0.0
    %955 = vmatpush1.xpose.msra.mxu0 0.0
    %956 = vmatprep.subr.mxu0 0.0
    %957 = vmatpush1.xpose.msra.mxu0 0.0
    %958 = vmatprep.subr.mxu0 0.0
    %959 = vmatpush1.xpose.msra.mxu0 0.0
    %960 = vmatprep.mubr.f32.mxu0 0.0
    %961 = vmatmul.mubr.f32.gmra.mrb[0].mxu0 %v892
    %v962 = vpop.f32.mrb[0].mxu0
    %v963 = vadd.f32 0.0, %v962
    %v964 = vpop.f32.mrb[0].mxu0
    %965 = vdwg.mxu0
    %v966 = vsel %vm157, %v885, -inf
    %967 = vmax.xlane.f32.xlu0 %v966
    %v968 = vpop.xlane.xlu0 %967
    %v969 = vsel %vm157, %v963, -inf
    %970 = vmax.xlane.f32.xlu0 %v969
    %v971 = vpop.xlane.xlu0 %970
    %v972 = vsub.f32 %v885, %v968
    %v973 = vsub.f32 %v963, %v971
    %v974 = vmul.f32 %v972, 1.442695
    %v975 = vpow.pop %v974
    %v976 = vmul.f32 %v973, 1.442695
    %v977 = vpow.pop %v976
    %v978 = vsel %vm157, %v975, 0.0
    %979 = vadd.xlane.f32.xlu0 %v978
    %v980 = vpop.xlane.xlu0 %979
    %v981 = vsel %vm157, %v977, 0.0
    %982 = vadd.xlane.f32.xlu0 %v981
    %v983 = vpop.xlane.xlu0 %982
    %v984 = vrcp.pop %v980
    %v985 = vmul.f32 %v975, %v984
    %v986 = vrcp.pop %v983
    %v987 = vmul.f32 %v977, %v986
    %988 = vrot.lane.b32.xlu0 %v147, 112
    %v989 = vpop.permute.xlu0 %988
    %v992 = vsel %vm157, %v985, 0
    %994 = vmatprep.subr.mxu0 0.0
    %995 = vmatpush1.msra.mxu0 %v989
    %996 = vmatprep.subr.mxu0 0.0
    %997 = vmatpush1.msra.mxu0 0.0
    %998 = vmatprep.subr.mxu0 0.0
    %999 = vmatpush1.msra.mxu0 0.0
    %1000 = vmatprep.subr.mxu0 0.0
    %1001 = vmatpush1.msra.mxu0 0.0
    %1002 = vmatprep.subr.mxu0 0.0
    %1003 = vmatpush1.msra.mxu0 0.0
    %1004 = vmatprep.subr.mxu0 0.0
    %1005 = vmatpush1.msra.mxu0 0.0
    %1006 = vmatprep.subr.mxu0 0.0
    %1007 = vmatpush1.msra.mxu0 0.0
    %1008 = vmatprep.subr.mxu0 0.0
    %1009 = vmatpush1.msra.mxu0 0.0
    %1010 = vmatprep.subr.mxu0 0.0
    %1011 = vmatpush1.msra.mxu0 0.0
    %1012 = vmatprep.subr.mxu0 0.0
    %1013 = vmatpush1.msra.mxu0 0.0
    %1014 = vmatprep.subr.mxu0 0.0
    %1015 = vmatpush1.msra.mxu0 0.0
    %1016 = vmatprep.subr.mxu0 0.0
    %1017 = vmatpush1.msra.mxu0 0.0
    %1018 = vmatprep.subr.mxu0 0.0
    %1019 = vmatpush1.msra.mxu0 0.0
    %1020 = vmatprep.subr.mxu0 0.0
    %1021 = vmatpush1.msra.mxu0 0.0
    %1022 = vmatprep.subr.mxu0 0.0
    %1023 = vmatpush1.msra.mxu0 0.0
    %1024 = vmatprep.subr.mxu0 0.0
    %1025 = vmatpush1.msra.mxu0 0.0
    %1026 = vmatprep.subr.mxu0 0.0
    %1027 = vmatpush1.msra.mxu0 0.0
    %1028 = vmatprep.subr.mxu0 0.0
    %1029 = vmatpush1.msra.mxu0 0.0
    %1030 = vmatprep.subr.mxu0 0.0
    %1031 = vmatpush1.msra.mxu0 0.0
    %1032 = vmatprep.subr.mxu0 0.0
    %1033 = vmatpush1.msra.mxu0 0.0
    %1034 = vmatprep.subr.mxu0 0.0
    %1035 = vmatpush1.msra.mxu0 0.0
    %1036 = vmatprep.subr.mxu0 0.0
    %1037 = vmatpush1.msra.mxu0 0.0
    %1038 = vmatprep.subr.mxu0 0.0
    %1039 = vmatpush1.msra.mxu0 0.0
    %1040 = vmatprep.subr.mxu0 0.0
    %1041 = vmatpush1.msra.mxu0 0.0
    %1042 = vmatprep.subr.mxu0 0.0
    %1043 = vmatpush1.msra.mxu0 0.0
    %1044 = vmatprep.subr.mxu0 0.0
    %1045 = vmatpush1.msra.mxu0 0.0
    %1046 = vmatprep.subr.mxu0 0.0
    %1047 = vmatpush1.msra.mxu0 0.0
    %1048 = vmatprep.subr.mxu0 0.0
    %1049 = vmatpush1.msra.mxu0 0.0
    %1050 = vmatprep.subr.mxu0 0.0
    %1051 = vmatpush1.msra.mxu0 0.0
    %1052 = vmatprep.subr.mxu0 0.0
    %1053 = vmatpush1.msra.mxu0 0.0
    %1054 = vmatprep.subr.mxu0 0.0
    %1055 = vmatpush1.msra.mxu0 0.0
    %1056 = vmatprep.subr.mxu0 0.0
    %1057 = vmatpush1.msra.mxu0 0.0
    %1058 = vmatprep.mubr.f32.mxu0 0.0
    %1059 = vmatmul.mubr.f32.gmra.mrb[0].mxu0 %v992
    %v1060 = vpop.f32.mrb[0].mxu0
    %v1061 = vadd.f32 0.0, %v1060
    %v1062 = vpop.f32.mrb[0].mxu0
    %1063 = vdwg.mxu0
    %1064 = vrot.lane.b32.xlu0 %v152, 112
    %v1065 = vpop.permute.xlu0 %1064
    %v1068 = vsel %vm157, %v987, 0
    %1070 = vmatprep.subr.mxu0 0.0
    %1071 = vmatpush1.msra.mxu0 %v1065
    %1072 = vmatprep.subr.mxu0 0.0
    %1073 = vmatpush1.msra.mxu0 0.0
    %1074 = vmatprep.subr.mxu0 0.0
    %1075 = vmatpush1.msra.mxu0 0.0
    %1076 = vmatprep.subr.mxu0 0.0
    %1077 = vmatpush1.msra.mxu0 0.0
    %1078 = vmatprep.subr.mxu0 0.0
    %1079 = vmatpush1.msra.mxu0 0.0
    %1080 = vmatprep.subr.mxu0 0.0
    %1081 = vmatpush1.msra.mxu0 0.0
    %1082 = vmatprep.subr.mxu0 0.0
    %1083 = vmatpush1.msra.mxu0 0.0
    %1084 = vmatprep.subr.mxu0 0.0
    %1085 = vmatpush1.msra.mxu0 0.0
    %1086 = vmatprep.subr.mxu0 0.0
    %1087 = vmatpush1.msra.mxu0 0.0
    %1088 = vmatprep.subr.mxu0 0.0
    %1089 = vmatpush1.msra.mxu0 0.0
    %1090 = vmatprep.subr.mxu0 0.0
    %1091 = vmatpush1.msra.mxu0 0.0
    %1092 = vmatprep.subr.mxu0 0.0
    %1093 = vmatpush1.msra.mxu0 0.0
    %1094 = vmatprep.subr.mxu0 0.0
    %1095 = vmatpush1.msra.mxu0 0.0
    %1096 = vmatprep.subr.mxu0 0.0
    %1097 = vmatpush1.msra.mxu0 0.0
    %1098 = vmatprep.subr.mxu0 0.0
    %1099 = vmatpush1.msra.mxu0 0.0
    %1100 = vmatprep.subr.mxu0 0.0
    %1101 = vmatpush1.msra.mxu0 0.0
    %1102 = vmatprep.subr.mxu0 0.0
    %1103 = vmatpush1.msra.mxu0 0.0
    %1104 = vmatprep.subr.mxu0 0.0
    %1105 = vmatpush1.msra.mxu0 0.0
    %1106 = vmatprep.subr.mxu0 0.0
    %1107 = vmatpush1.msra.mxu0 0.0
    %1108 = vmatprep.subr.mxu0 0.0
    %1109 = vmatpush1.msra.mxu0 0.0
    %1110 = vmatprep.subr.mxu0 0.0
    %1111 = vmatpush1.msra.mxu0 0.0
    %1112 = vmatprep.subr.mxu0 0.0
    %1113 = vmatpush1.msra.mxu0 0.0
    %1114 = vmatprep.subr.mxu0 0.0
    %1115 = vmatpush1.msra.mxu0 0.0
    %1116 = vmatprep.subr.mxu0 0.0
    %1117 = vmatpush1.msra.mxu0 0.0
    %1118 = vmatprep.subr.mxu0 0.0
    %1119 = vmatpush1.msra.mxu0 0.0
    %1120 = vmatprep.subr.mxu0 0.0
    %1121 = vmatpush1.msra.mxu0 0.0
    %1122 = vmatprep.subr.mxu0 0.0
    %1123 = vmatpush1.msra.mxu0 0.0
    %1124 = vmatprep.subr.mxu0 0.0
    %1125 = vmatpush1.msra.mxu0 0.0
    %1126 = vmatprep.subr.mxu0 0.0
    %1127 = vmatpush1.msra.mxu0 0.0
    %1128 = vmatprep.subr.mxu0 0.0
    %1129 = vmatpush1.msra.mxu0 0.0
    %1130 = vmatprep.subr.mxu0 0.0
    %1131 = vmatpush1.msra.mxu0 0.0
    %1132 = vmatprep.subr.mxu0 0.0
    %1133 = vmatpush1.msra.mxu0 0.0
    %1134 = vmatprep.mubr.f32.mxu0 0.0
    %1135 = vmatmul.mubr.f32.gmra.mrb[0].mxu0 %v1068
    %v1136 = vpop.f32.mrb[0].mxu0
    %v1137 = vadd.f32 0.0, %v1136
    %v1138 = vpop.f32.mrb[0].mxu0
    %1139 = vdwg.mxu0
    %1140 = vrot.lane.b32.xlu0 %v155, 104
    %v1141 = vpop.permute.xlu0 %1140
    %1142 = vrot.lane.b32.xlu0 %v137, 104
    %v1143 = vpop.permute.xlu0 %1142
    %v1144 = vsel %vm157, %v1141, 0
    %v1146 = vsel %vm157, %v1143, 0
    %1148 = vmatprep.subr.mxu0 0.0
    %1149 = vmatpush1.xpose.msra.mxu0 %v1146
    %1150 = vmatprep.subr.mxu0 0.0
    %1151 = vmatpush1.xpose.msra.mxu0 0.0
    %1152 = vmatprep.subr.mxu0 0.0
    %1153 = vmatpush1.xpose.msra.mxu0 0.0
    %1154 = vmatprep.subr.mxu0 0.0
    %1155 = vmatpush1.xpose.msra.mxu0 0.0
    %1156 = vmatprep.subr.mxu0 0.0
    %1157 = vmatpush1.xpose.msra.mxu0 0.0
    %1158 = vmatprep.subr.mxu0 0.0
    %1159 = vmatpush1.xpose.msra.mxu0 0.0
    %1160 = vmatprep.subr.mxu0 0.0
    %1161 = vmatpush1.xpose.msra.mxu0 0.0
    %1162 = vmatprep.subr.mxu0 0.0
    %1163 = vmatpush1.xpose.msra.mxu0 0.0
    %1164 = vmatprep.subr.mxu0 0.0
    %1165 = vmatpush1.xpose.msra.mxu0 0.0
    %1166 = vmatprep.subr.mxu0 0.0
    %1167 = vmatpush1.xpose.msra.mxu0 0.0
    %1168 = vmatprep.subr.mxu0 0.0
    %1169 = vmatpush1.xpose.msra.mxu0 0.0
    %1170 = vmatprep.subr.mxu0 0.0
    %1171 = vmatpush1.xpose.msra.mxu0 0.0
    %1172 = vmatprep.subr.mxu0 0.0
    %1173 = vmatpush1.xpose.msra.mxu0 0.0
    %1174 = vmatprep.subr.mxu0 0.0
    %1175 = vmatpush1.xpose.msra.mxu0 0.0
    %1176 = vmatprep.subr.mxu0 0.0
    %1177 = vmatpush1.xpose.msra.mxu0 0.0
    %1178 = vmatprep.subr.mxu0 0.0
    %1179 = vmatpush1.xpose.msra.mxu0 0.0
    %1180 = vmatprep.subr.mxu0 0.0
    %1181 = vmatpush1.xpose.msra.mxu0 0.0
    %1182 = vmatprep.subr.mxu0 0.0
    %1183 = vmatpush1.xpose.msra.mxu0 0.0
    %1184 = vmatprep.subr.mxu0 0.0
    %1185 = vmatpush1.xpose.msra.mxu0 0.0
    %1186 = vmatprep.subr.mxu0 0.0
    %1187 = vmatpush1.xpose.msra.mxu0 0.0
    %1188 = vmatprep.subr.mxu0 0.0
    %1189 = vmatpush1.xpose.msra.mxu0 0.0
    %1190 = vmatprep.subr.mxu0 0.0
    %1191 = vmatpush1.xpose.msra.mxu0 0.0
    %1192 = vmatprep.subr.mxu0 0.0
    %1193 = vmatpush1.xpose.msra.mxu0 0.0
    %1194 = vmatprep.subr.mxu0 0.0
    %1195 = vmatpush1.xpose.msra.mxu0 0.0
    %1196 = vmatprep.subr.mxu0 0.0
    %1197 = vmatpush1.xpose.msra.mxu0 0.0
    %1198 = vmatprep.subr.mxu0 0.0
    %1199 = vmatpush1.xpose.msra.mxu0 0.0
    %1200 = vmatprep.subr.mxu0 0.0
    %1201 = vmatpush1.xpose.msra.mxu0 0.0
    %1202 = vmatprep.subr.mxu0 0.0
    %1203 = vmatpush1.xpose.msra.mxu0 0.0
    %1204 = vmatprep.subr.mxu0 0.0
    %1205 = vmatpush1.xpose.msra.mxu0 0.0
    %1206 = vmatprep.subr.mxu0 0.0
    %1207 = vmatpush1.xpose.msra.mxu0 0.0
    %1208 = vmatprep.subr.mxu0 0.0
    %1209 = vmatpush1.xpose.msra.mxu0 0.0
    %1210 = vmatprep.subr.mxu0 0.0
    %1211 = vmatpush1.xpose.msra.mxu0 0.0
    %1212 = vmatprep.mubr.f32.mxu0 0.0
    %1213 = vmatmul.mubr.f32.gmra.mrb[0].mxu0 %v1144
    %v1214 = vpop.f32.mrb[0].mxu0
    %v1215 = vadd.f32 0.0, %v1214
    %v1216 = vpop.f32.mrb[0].mxu0
    %1217 = vdwg.mxu0
    %1218 = vrot.lane.b32.xlu0 %v156, 104
    %v1219 = vpop.permute.xlu0 %1218
    %1220 = vrot.lane.b32.xlu0 %v142, 104
    %v1221 = vpop.permute.xlu0 %1220
    %v1222 = vsel %vm157, %v1219, 0
    %v1224 = vsel %vm157, %v1221, 0
    %1226 = vmatprep.subr.mxu0 0.0
    %1227 = vmatpush1.xpose.msra.mxu0 %v1224
    %1228 = vmatprep.subr.mxu0 0.0
    %1229 = vmatpush1.xpose.msra.mxu0 0.0
    %1230 = vmatprep.subr.mxu0 0.0
    %1231 = vmatpush1.xpose.msra.mxu0 0.0
    %1232 = vmatprep.subr.mxu0 0.0
    %1233 = vmatpush1.xpose.msra.mxu0 0.0
    %1234 = vmatprep.subr.mxu0 0.0
    %1235 = vmatpush1.xpose.msra.mxu0 0.0
    %1236 = vmatprep.subr.mxu0 0.0
    %1237 = vmatpush1.xpose.msra.mxu0 0.0
    %1238 = vmatprep.subr.mxu0 0.0
    %1239 = vmatpush1.xpose.msra.mxu0 0.0
    %1240 = vmatprep.subr.mxu0 0.0
    %1241 = vmatpush1.xpose.msra.mxu0 0.0
    %1242 = vmatprep.subr.mxu0 0.0
    %1243 = vmatpush1.xpose.msra.mxu0 0.0
    %1244 = vmatprep.subr.mxu0 0.0
    %1245 = vmatpush1.xpose.msra.mxu0 0.0
    %1246 = vmatprep.subr.mxu0 0.0
    %1247 = vmatpush1.xpose.msra.mxu0 0.0
    %1248 = vmatprep.subr.mxu0 0.0
    %1249 = vmatpush1.xpose.msra.mxu0 0.0
    %1250 = vmatprep.subr.mxu0 0.0
    %1251 = vmatpush1.xpose.msra.mxu0 0.0
    %1252 = vmatprep.subr.mxu0 0.0
    %1253 = vmatpush1.xpose.msra.mxu0 0.0
    %1254 = vmatprep.subr.mxu0 0.0
    %1255 = vmatpush1.xpose.msra.mxu0 0.0
    %1256 = vmatprep.subr.mxu0 0.0
    %1257 = vmatpush1.xpose.msra.mxu0 0.0
    %1258 = vmatprep.subr.mxu0 0.0
    %1259 = vmatpush1.xpose.msra.mxu0 0.0
    %1260 = vmatprep.subr.mxu0 0.0
    %1261 = vmatpush1.xpose.msra.mxu0 0.0
    %1262 = vmatprep.subr.mxu0 0.0
    %1263 = vmatpush1.xpose.msra.mxu0 0.0
    %1264 = vmatprep.subr.mxu0 0.0
    %1265 = vmatpush1.xpose.msra.mxu0 0.0
    %1266 = vmatprep.subr.mxu0 0.0
    %1267 = vmatpush1.xpose.msra.mxu0 0.0
    %1268 = vmatprep.subr.mxu0 0.0
    %1269 = vmatpush1.xpose.msra.mxu0 0.0
    %1270 = vmatprep.subr.mxu0 0.0
    %1271 = vmatpush1.xpose.msra.mxu0 0.0
    %1272 = vmatprep.subr.mxu0 0.0
    %1273 = vmatpush1.xpose.msra.mxu0 0.0
    %1274 = vmatprep.subr.mxu0 0.0
    %1275 = vmatpush1.xpose.msra.mxu0 0.0
    %1276 = vmatprep.subr.mxu0 0.0
    %1277 = vmatpush1.xpose.msra.mxu0 0.0
    %1278 = vmatprep.subr.mxu0 0.0
    %1279 = vmatpush1.xpose.msra.mxu0 0.0
    %1280 = vmatprep.subr.mxu0 0.0
    %1281 = vmatpush1.xpose.msra.mxu0 0.0
    %1282 = vmatprep.subr.mxu0 0.0
    %1283 = vmatpush1.xpose.msra.mxu0 0.0
    %1284 = vmatprep.subr.mxu0 0.0
    %1285 = vmatpush1.xpose.msra.mxu0 0.0
    %1286 = vmatprep.subr.mxu0 0.0
    %1287 = vmatpush1.xpose.msra.mxu0 0.0
    %1288 = vmatprep.subr.mxu0 0.0
    %1289 = vmatpush1.xpose.msra.mxu0 0.0
    %1290 = vmatprep.mubr.f32.mxu0 0.0
    %1291 = vmatmul.mubr.f32.gmra.mrb[0].mxu0 %v1222
    %v1292 = vpop.f32.mrb[0].mxu0
    %v1293 = vadd.f32 0.0, %v1292
    %v1294 = vpop.f32.mrb[0].mxu0
    %1295 = vdwg.mxu0
    %v1296 = vsel %vm157, %v1215, -inf
    %1297 = vmax.xlane.f32.xlu0 %v1296
    %v1298 = vpop.xlane.xlu0 %1297
    %v1299 = vsel %vm157, %v1293, -inf
    %1300 = vmax.xlane.f32.xlu0 %v1299
    %v1301 = vpop.xlane.xlu0 %1300
    %v1302 = vsub.f32 %v1215, %v1298
    %v1303 = vsub.f32 %v1293, %v1301
    %v1304 = vmul.f32 %v1302, 1.442695
    %v1305 = vpow.pop %v1304
    %v1306 = vmul.f32 %v1303, 1.442695
    %v1307 = vpow.pop %v1306
    %v1308 = vsel %vm157, %v1305, 0.0
    %1309 = vadd.xlane.f32.xlu0 %v1308
    %v1310 = vpop.xlane.xlu0 %1309
    %v1311 = vsel %vm157, %v1307, 0.0
    %1312 = vadd.xlane.f32.xlu0 %v1311
    %v1313 = vpop.xlane.xlu0 %1312
    %v1314 = vrcp.pop %v1310
    %v1315 = vmul.f32 %v1305, %v1314
    %v1316 = vrcp.pop %v1313
    %v1317 = vmul.f32 %v1307, %v1316
    %1318 = vrot.lane.b32.xlu0 %v147, 104
    %v1319 = vpop.permute.xlu0 %1318
    %v1322 = vsel %vm157, %v1315, 0
    %1324 = vmatprep.subr.mxu0 0.0
    %1325 = vmatpush1.msra.mxu0 %v1319
    %1326 = vmatprep.subr.mxu0 0.0
    %1327 = vmatpush1.msra.mxu0 0.0
    %1328 = vmatprep.subr.mxu0 0.0
    %1329 = vmatpush1.msra.mxu0 0.0
    %1330 = vmatprep.subr.mxu0 0.0
    %1331 = vmatpush1.msra.mxu0 0.0
    %1332 = vmatprep.subr.mxu0 0.0
    %1333 = vmatpush1.msra.mxu0 0.0
    %1334 = vmatprep.subr.mxu0 0.0
    %1335 = vmatpush1.msra.mxu0 0.0
    %1336 = vmatprep.subr.mxu0 0.0
    %1337 = vmatpush1.msra.mxu0 0.0
    %1338 = vmatprep.subr.mxu0 0.0
    %1339 = vmatpush1.msra.mxu0 0.0
    %1340 = vmatprep.subr.mxu0 0.0
    %1341 = vmatpush1.msra.mxu0 0.0
    %1342 = vmatprep.subr.mxu0 0.0
    %1343 = vmatpush1.msra.mxu0 0.0
    %1344 = vmatprep.subr.mxu0 0.0
    %1345 = vmatpush1.msra.mxu0 0.0
    %1346 = vmatprep.subr.mxu0 0.0
    %1347 = vmatpush1.msra.mxu0 0.0
    %1348 = vmatprep.subr.mxu0 0.0
    %1349 = vmatpush1.msra.mxu0 0.0
    %1350 = vmatprep.subr.mxu0 0.0
    %1351 = vmatpush1.msra.mxu0 0.0
    %1352 = vmatprep.subr.mxu0 0.0
    %1353 = vmatpush1.msra.mxu0 0.0
    %1354 = vmatprep.subr.mxu0 0.0
    %1355 = vmatpush1.msra.mxu0 0.0
    %1356 = vmatprep.subr.mxu0 0.0
    %1357 = vmatpush1.msra.mxu0 0.0
    %1358 = vmatprep.subr.mxu0 0.0
    %1359 = vmatpush1.msra.mxu0 0.0
    %1360 = vmatprep.subr.mxu0 0.0
    %1361 = vmatpush1.msra.mxu0 0.0
    %1362 = vmatprep.subr.mxu0 0.0
    %1363 = vmatpush1.msra.mxu0 0.0
    %1364 = vmatprep.subr.mxu0 0.0
    %1365 = vmatpush1.msra.mxu0 0.0
    %1366 = vmatprep.subr.mxu0 0.0
    %1367 = vmatpush1.msra.mxu0 0.0
    %1368 = vmatprep.subr.mxu0 0.0
    %1369 = vmatpush1.msra.mxu0 0.0
    %1370 = vmatprep.subr.mxu0 0.0
    %1371 = vmatpush1.msra.mxu0 0.0
    %1372 = vmatprep.subr.mxu0 0.0
    %1373 = vmatpush1.msra.mxu0 0.0
    %1374 = vmatprep.subr.mxu0 0.0
    %1375 = vmatpush1.msra.mxu0 0.0
    %1376 = vmatprep.subr.mxu0 0.0
    %1377 = vmatpush1.msra.mxu0 0.0
    %1378 = vmatprep.subr.mxu0 0.0
    %1379 = vmatpush1.msra.mxu0 0.0
    %1380 = vmatprep.subr.mxu0 0.0
    %1381 = vmatpush1.msra.mxu0 0.0
    %1382 = vmatprep.subr.mxu0 0.0
    %1383 = vmatpush1.msra.mxu0 0.0
    %1384 = vmatprep.subr.mxu0 0.0
    %1385 = vmatpush1.msra.mxu0 0.0
    %1386 = vmatprep.subr.mxu0 0.0
    %1387 = vmatpush1.msra.mxu0 0.0
    %1388 = vmatprep.mubr.f32.mxu0 0.0
    %1389 = vmatmul.mubr.f32.gmra.mrb[0].mxu0 %v1322
    %v1390 = vpop.f32.mrb[0].mxu0
    %v1391 = vadd.f32 0.0, %v1390
    %v1392 = vpop.f32.mrb[0].mxu0
    %1393 = vdwg.mxu0
    %1394 = vrot.lane.b32.xlu0 %v152, 104
    %v1395 = vpop.permute.xlu0 %1394
    %v1398 = vsel %vm157, %v1317, 0
    %1400 = vmatprep.subr.mxu0 0.0
    %1401 = vmatpush1.msra.mxu0 %v1395
    %1402 = vmatprep.subr.mxu0 0.0
    %1403 = vmatpush1.msra.mxu0 0.0
    %1404 = vmatprep.subr.mxu0 0.0
    %1405 = vmatpush1.msra.mxu0 0.0
    %1406 = vmatprep.subr.mxu0 0.0
    %1407 = vmatpush1.msra.mxu0 0.0
    %1408 = vmatprep.subr.mxu0 0.0
    %1409 = vmatpush1.msra.mxu0 0.0
    %1410 = vmatprep.subr.mxu0 0.0
    %1411 = vmatpush1.msra.mxu0 0.0
    %1412 = vmatprep.subr.mxu0 0.0
    %1413 = vmatpush1.msra.mxu0 0.0
    %1414 = vmatprep.subr.mxu0 0.0
    %1415 = vmatpush1.msra.mxu0 0.0
    %1416 = vmatprep.subr.mxu0 0.0
    %1417 = vmatpush1.msra.mxu0 0.0
    %1418 = vmatprep.subr.mxu0 0.0
    %1419 = vmatpush1.msra.mxu0 0.0
    %1420 = vmatprep.subr.mxu0 0.0
    %1421 = vmatpush1.msra.mxu0 0.0
    %1422 = vmatprep.subr.mxu0 0.0
    %1423 = vmatpush1.msra.mxu0 0.0
    %1424 = vmatprep.subr.mxu0 0.0
    %1425 = vmatpush1.msra.mxu0 0.0
    %1426 = vmatprep.subr.mxu0 0.0
    %1427 = vmatpush1.msra.mxu0 0.0
    %1428 = vmatprep.subr.mxu0 0.0
    %1429 = vmatpush1.msra.mxu0 0.0
    %1430 = vmatprep.subr.mxu0 0.0
    %1431 = vmatpush1.msra.mxu0 0.0
    %1432 = vmatprep.subr.mxu0 0.0
    %1433 = vmatpush1.msra.mxu0 0.0
    %1434 = vmatprep.subr.mxu0 0.0
    %1435 = vmatpush1.msra.mxu0 0.0
    %1436 = vmatprep.subr.mxu0 0.0
    %1437 = vmatpush1.msra.mxu0 0.0
    %1438 = vmatprep.subr.mxu0 0.0
    %1439 = vmatpush1.msra.mxu0 0.0
    %1440 = vmatprep.subr.mxu0 0.0
    %1441 = vmatpush1.msra.mxu0 0.0
    %1442 = vmatprep.subr.mxu0 0.0
    %1443 = vmatpush1.msra.mxu0 0.0
    %1444 = vmatprep.subr.mxu0 0.0
    %1445 = vmatpush1.msra.mxu0 0.0
    %1446 = vmatprep.subr.mxu0 0.0
    %1447 = vmatpush1.msra.mxu0 0.0
    %1448 = vmatprep.subr.mxu0 0.0
    %1449 = vmatpush1.msra.mxu0 0.0
    %1450 = vmatprep.subr.mxu0 0.0
    %1451 = vmatpush1.msra.mxu0 0.0
    %1452 = vmatprep.subr.mxu0 0.0
    %1453 = vmatpush1.msra.mxu0 0.0
    %1454 = vmatprep.subr.mxu0 0.0
    %1455 = vmatpush1.msra.mxu0 0.0
    %1456 = vmatprep.subr.mxu0 0.0
    %1457 = vmatpush1.msra.mxu0 0.0
    %1458 = vmatprep.subr.mxu0 0.0
    %1459 = vmatpush1.msra.mxu0 0.0
    %1460 = vmatprep.subr.mxu0 0.0
    %1461 = vmatpush1.msra.mxu0 0.0
    %1462 = vmatprep.subr.mxu0 0.0
    %1463 = vmatpush1.msra.mxu0 0.0
    %1464 = vmatprep.mubr.f32.mxu0 0.0
    %1465 = vmatmul.mubr.f32.gmra.mrb[0].mxu0 %v1398
    %v1466 = vpop.f32.mrb[0].mxu0
    %v1467 = vadd.f32 0.0, %v1466
    %v1468 = vpop.f32.mrb[0].mxu0
    %1469 = vdwg.mxu0
    %1472 = vrot.lane.b32.xlu0 %v730, 8
    %v1473 = vpop.permute.xlu0 %1472
    %1474 = vrot.lane.b32.xlu0 %v807, 8
    %v1475 = vpop.permute.xlu0 %1474
    %1480 = vrot.lane.b32.xlu0 %v1061, 16
    %v1481 = vpop.permute.xlu0 %1480
    %1482 = vrot.lane.b32.xlu0 %v1137, 16
    %v1483 = vpop.permute.xlu0 %1482
    %1488 = vrot.lane.b32.xlu0 %v1391, 24
    %v1489 = vpop.permute.xlu0 %1488
    %1490 = vrot.lane.b32.xlu0 %v1467, 24
    %v1491 = vpop.permute.xlu0 %1490
    %v1494 = vsel %vm157, %v402, %v1473
    %v1495 = vsel %vm157, %v475, %v1475
    %vm1496 = vcmask 130048
    %v1497 = vsel %vm1496, %v1494, %v1481
    %v1498 = vsel %vm1496, %v1495, %v1483
    %vm1499 = vcmask 195584
    %v1500 = vsel %vm1499, %v1497, %v1489
    %v1501 = vsel %vm1499, %v1498, %v1491
    %v1503 = vsel %vm29, %v1500, 0
    %v1506 = vsel %vm29, %v1501, 0
    %v1509 = vsel %vm29, %v19, 0
    %v1512 = vsel %vm29, %v20, 0
    %v1515 = vsel %vm29, %v21, 0
    %v1518 = vsel %vm29, %v22, 0
    %1520 = vmatprep.subr.mxu0 0.0
    %1521 = vmatpush1.xpose.msra.mxu0 %v1509
    %1522 = vmatprep.subr.mxu0 0.0
    %1523 = vmatpush1.xpose.msra.mxu0 %v1512
    %1524 = vmatprep.subr.mxu0 0.0
    %1525 = vmatpush1.xpose.msra.mxu0 %v1515
    %1526 = vmatprep.subr.mxu0 0.0
    %1527 = vmatpush1.xpose.msra.mxu0 %v1518
    %1528 = vmatprep.subr.mxu0 0.0
    %1529 = vmatpush1.xpose.msra.mxu0 0.0
    %1530 = vmatprep.subr.mxu0 0.0
    %1531 = vmatpush1.xpose.msra.mxu0 0.0
    %1532 = vmatprep.subr.mxu0 0.0
    %1533 = vmatpush1.xpose.msra.mxu0 0.0
    %1534 = vmatprep.subr.mxu0 0.0
    %1535 = vmatpush1.xpose.msra.mxu0 0.0
    %1536 = vmatprep.subr.mxu0 0.0
    %1537 = vmatpush1.xpose.msra.mxu0 0.0
    %1538 = vmatprep.subr.mxu0 0.0
    %1539 = vmatpush1.xpose.msra.mxu0 0.0
    %1540 = vmatprep.subr.mxu0 0.0
    %1541 = vmatpush1.xpose.msra.mxu0 0.0
    %1542 = vmatprep.subr.mxu0 0.0
    %1543 = vmatpush1.xpose.msra.mxu0 0.0
    %1544 = vmatprep.subr.mxu0 0.0
    %1545 = vmatpush1.xpose.msra.mxu0 0.0
    %1546 = vmatprep.subr.mxu0 0.0
    %1547 = vmatpush1.xpose.msra.mxu0 0.0
    %1548 = vmatprep.subr.mxu0 0.0
    %1549 = vmatpush1.xpose.msra.mxu0 0.0
    %1550 = vmatprep.subr.mxu0 0.0
    %1551 = vmatpush1.xpose.msra.mxu0 0.0
    %1552 = vmatprep.subr.mxu0 0.0
    %1553 = vmatpush1.xpose.msra.mxu0 0.0
    %1554 = vmatprep.subr.mxu0 0.0
    %1555 = vmatpush1.xpose.msra.mxu0 0.0
    %1556 = vmatprep.subr.mxu0 0.0
    %1557 = vmatpush1.xpose.msra.mxu0 0.0
    %1558 = vmatprep.subr.mxu0 0.0
    %1559 = vmatpush1.xpose.msra.mxu0 0.0
    %1560 = vmatprep.subr.mxu0 0.0
    %1561 = vmatpush1.xpose.msra.mxu0 0.0
    %1562 = vmatprep.subr.mxu0 0.0
    %1563 = vmatpush1.xpose.msra.mxu0 0.0
    %1564 = vmatprep.subr.mxu0 0.0
    %1565 = vmatpush1.xpose.msra.mxu0 0.0
    %1566 = vmatprep.subr.mxu0 0.0
    %1567 = vmatpush1.xpose.msra.mxu0 0.0
    %1568 = vmatprep.subr.mxu0 0.0
    %1569 = vmatpush1.xpose.msra.mxu0 0.0
    %1570 = vmatprep.subr.mxu0 0.0
    %1571 = vmatpush1.xpose.msra.mxu0 0.0
    %1572 = vmatprep.subr.mxu0 0.0
    %1573 = vmatpush1.xpose.msra.mxu0 0.0
    %1574 = vmatprep.subr.mxu0 0.0
    %1575 = vmatpush1.xpose.msra.mxu0 0.0
    %1576 = vmatprep.subr.mxu0 0.0
    %1577 = vmatpush1.xpose.msra.mxu0 0.0
    %1578 = vmatprep.subr.mxu0 0.0
    %1579 = vmatpush1.xpose.msra.mxu0 0.0
    %1580 = vmatprep.subr.mxu0 0.0
    %1581 = vmatpush1.xpose.msra.mxu0 0.0
    %1582 = vmatprep.subr.mxu0 0.0
    %1583 = vmatpush1.xpose.msra.mxu0 0.0
    %1584 = vmatprep.mubr.f32.mxu0 0.0
    %1585 = vmatmul.mubr.f32.gmra.mrb[0].mxu0 %v1503
    %v1586 = vpop.f32.mrb[0].mxu0
    %v1587 = vadd.f32 0.0, %v1586
    %v1588 = vpop.f32.mrb[0].mxu0
    %1589 = vmatprep.mubr.f32.mxu0 0.0
    %1590 = vmatmul.mubr.f32.gmra.mrb[0].mxu0 %v1506
    %v1591 = vpop.f32.mrb[0].mxu0
    %v1592 = vadd.f32 0.0, %v1591
    %v1593 = vpop.f32.mrb[0].mxu0
    %1594 = vdwg.mxu0
    %1595 = vst.msk [vmem:[#allocation2] sm:$0xff] %vm29, %v1587
    %1596 = vst.msk [vmem:[#allocation2 + $0x8] sm:$0xff] %vm29, %v1592
    // Predicated region
    $region14: #{multi_head_attention.1} parent=1 // pred_check
      _
    $region15: #{multi_head_attention.1} parent=1 // pred_check_branch
      %1598 = sbr.rel (0) target = $region17
    $region16: #{multi_head_attention.1} parent=1 // pred_region
      %s1600 = ssub.s32 256, 256
      %1601 = vsyncadd [#allocation3], %s1600
      %s1602 = sshll.u32 [#allocation2], 4
      %s1603 = int_to_ptr.vmem [resolvable:$true] %s1602
      %1608 = dma.vmem_to_hbm [thread:$0]  %s1603, 256, %s3, [#allocation3], 128, 128, 8
    $region17: #{multi_head_attention.1} parent=1 // pred_fallthru
      _
    // Predicated region
    $region18: #{multi_head_attention.1} parent=1 // pred_check
      _
    $region19: #{multi_head_attention.1} parent=1 // pred_check_branch
      %1610 = sbr.rel (0) target = $region21
    $region20: #{multi_head_attention.1} parent=1 // pred_region
      %1611 = dma.done [#allocation3], 256
    $region21: #{multi_head_attention.1} parent=1 // pred_fallthru
      _
    %1612 = vsyncpa [#allocation3], 1

</llo_original>
